<compile_context>
chip_gen: v7x
topology: tpu7x:2x2x1
jax: 0.10.0
libtpu: 0.0.40
codegen_flags: <defaults>
</compile_context>

<pallas_src>
import math
import functools

import jax
import jax.numpy as jnp
from jax import lax
from jax.experimental import pallas as pl
from jax.experimental.pallas import tpu as pltpu

NEG_INF = -1.0e9
LN_EPS = 1e-6


# ----------------------------- fused encoder kernel -----------------------------
def _encoder_kernel(y_ref, bias_ref, wqkv_ref, bqkv_ref, wm_ref, bm_ref,
                    g1_ref, be1_ref, w1_ref, b1_ref, w2_ref, b2_ref,
                    g2_ref, be2_ref, o_ref, *, n_heads, eps):
    Bt, S, H = y_ref.shape
    d_h = H // n_heads

    y = y_ref[...]                                     # (Bt, S, H) f32
    y2 = y.reshape(Bt * S, H)                          # merge leading dims (lane dim unchanged)
    bias = bias_ref[...]                               # (Bt, 1, S) additive mask bias (f32)

    # Packed Q/K/V projection: one bf16 MXU matmul with M = Bt*S, N = 3H.
    # 1/sqrt(d_h) is already folded into the Q columns of wqkv/bqkv.
    qkv = jnp.dot(y2.astype(jnp.bfloat16), wqkv_ref[...],
                  preferred_element_type=jnp.float32) + bqkv_ref[...]      # (Bt*S, 3H) f32

    # Multi-head attention, batched over Bt per head; outputs concatenated in
    # registers into a lane-dense head-packed (Bt*S, H) value (== torch
    # .transpose(1,2).contiguous().view(B,S,H)).
    # NOTE: static Python loop is fine for small n_heads / S; at large S a
    # fori_loop over a head-major layout would bound the (S,S) live ranges.
    head_outs = []
    for h in range(n_heads):
        c = h * d_h
        q = qkv[:, c:c + d_h].reshape(Bt, S, d_h)                  # (Bt, S, d_h)
        k = qkv[:, H + c:H + c + d_h].reshape(Bt, S, d_h)
        v = qkv[:, 2 * H + c:2 * H + c + d_h].reshape(Bt, S, d_h)

        s = jnp.einsum('bqd,bkd->bqk',
                       q.astype(jnp.bfloat16), k.astype(jnp.bfloat16),
                       preferred_element_type=jnp.float32)         # (Bt, S, S) f32
        s = s + bias                                               # masked keys get -1e9
        s = s - jnp.max(s, axis=-1, keepdims=True)
        p = jnp.exp(s)
        denom = jnp.sum(p, axis=-1, keepdims=True)
        p = p * pl.reciprocal(denom, approx=True)                  # softmax (EUP recip)
        # TODO(synk): attention dropout omitted (eval-mode nn.Dropout is identity).
        head_outs.append(
            jnp.einsum('bqk,bkd->bqd',
                       p.astype(jnp.bfloat16), v.astype(jnp.bfloat16),
                       preferred_element_type=jnp.float32))        # (Bt, S, d_h) f32

    atted = jnp.concatenate(head_outs, axis=-1).reshape(Bt * S, H)  # head-packed (Bt*S, H)

    merged = jnp.dot(atted.astype(jnp.bfloat16), wm_ref[...],
                     preferred_element_type=jnp.float32) + bm_ref[...]

    def layer_norm(x, g, b):                          # openvqa LayerNorm (unbiased std)
        mean = jnp.mean(x, axis=-1, keepdims=True)
        d = x - mean
        std = jnp.sqrt(jnp.sum(d * d, axis=-1, keepdims=True) * (1.0 / (H - 1)))
        return g * d / (std + eps) + b                # exact divide (tolerance-critical)

    # dropout1 / dropout2 / FC dropout are identity in eval mode.
    x1 = layer_norm(y2 + merged, g1_ref[...], be1_ref[...])        # (Bt*S, H) f32

    h1 = jnp.dot(x1.astype(jnp.bfloat16), w1_ref[...],
                 preferred_element_type=jnp.float32) + b1_ref[...]
    h1 = jnp.maximum(h1, 0.0)                                      # FC: Linear + ReLU
    ffn = jnp.dot(h1.astype(jnp.bfloat16), w2_ref[...],
                  preferred_element_type=jnp.float32) + b2_ref[...]

    out = layer_norm(x1 + ffn, g2_ref[...], be2_ref[...])
    o_ref[...] = out.reshape(Bt, S, H)


def _const_spec(shape):
    nd = len(shape)
    return pl.BlockSpec(shape, lambda b, _nd=nd: (0,) * _nd)       # resident across grid


def _pick_batch_tile(B, S, target_rows=256):
    """Largest divisor Bt of B such that Bt*S stays near the MXU-filling target."""
    bt = 1
    for cand in range(1, B + 1):
        if B % cand == 0 and (cand == 1 or cand * S <= target_rows):
            bt = cand
    return bt


# ----------------------------- parameter packing (one-time, hoisted) -----------------------------
def pack_params(params, n_heads):
    """Pack/transposes weights once: Wq|Wk|Wv -> (H,3H) bf16 (scale folded into Q),
    merge/FFN weights transposed + bf16, biases/LayerNorm params as (1,N) f32 rows."""
    H = params['wq'].shape[0]
    FF = params['w1'].shape[0]
    d_h = H // n_heads
    scale = 1.0 / math.sqrt(d_h)

    w_qkv = jnp.concatenate(
        [params['wq'].T * scale, params['wk'].T, params['wv'].T], axis=1)
    b_qkv = jnp.concatenate(
        [params['bq'] * scale, params['bk'], params['bv']]).reshape(1, 3 * H)

    return dict(
        w_qkv=w_qkv.astype(jnp.bfloat16),
        b_qkv=b_qkv.astype(jnp.float32),
        wm=params['wm'].T.astype(jnp.bfloat16),
        bm=params['bm'].reshape(1, H).astype(jnp.float32),
        g1=params['g1'].reshape(1, H).astype(jnp.float32),
        be1=params['be1'].reshape(1, H).astype(jnp.float32),
        w1=params['w1'].T.astype(jnp.bfloat16),
        b1=params['b1'].reshape(1, FF).astype(jnp.float32),
        w2=params['w2'].T.astype(jnp.bfloat16),
        b2=params['b2'].reshape(1, H).astype(jnp.float32),
        g2=params['g2'].reshape(1, H).astype(jnp.float32),
        be2=params['be2'].reshape(1, H).astype(jnp.float32),
    )


def encoder_forward(y, y_mask, packed, n_heads):
    """y: (B, S, H) f32; y_mask: (B, 1, 1, S) bool, True == masked (padding)."""
    B, S, H = y.shape
    FF = packed['w1'].shape[1]
    Bt = _pick_batch_tile(B, S)

    # Pre-fold the boolean mask into an additive bias (B, 1, S).
    bias = jnp.where(y_mask[:, 0, 0, :], NEG_INF, 0.0).astype(jnp.float32)
    bias = bias.reshape(B, 1, S)

    kern = functools.partial(_encoder_kernel, n_heads=n_heads, eps=LN_EPS)

    return pl.pallas_call(
        kern,
        out_shape=jax.ShapeDtypeStruct((B, S, H), jnp.float32),
        grid=(B // Bt,),
        in_specs=[
            pl.BlockSpec((Bt, S, H), lambda b: (b, 0, 0)),    # y (Bt batches per step)
            pl.BlockSpec((Bt, 1, S), lambda b: (b, 0, 0)),    # additive mask bias
            _const_spec((H, 3 * H)), _const_spec((1, 3 * H)),  # packed QKV (bf16 / f32)
            _const_spec((H, H)), _const_spec((1, H)),          # merge
            _const_spec((1, H)), _const_spec((1, H)),          # LayerNorm1 a,b
            _const_spec((H, FF)), _const_spec((1, FF)),        # FFN fc1
            _const_spec((FF, H)), _const_spec((1, H)),         # FFN fc2
            _const_spec((1, H)), _const_spec((1, H)),          # LayerNorm2 a,b
        ],
        out_specs=pl.BlockSpec((Bt, S, H), lambda b: (b, 0, 0)),
        compiler_params=pltpu.CompilerParams(
            dimension_semantics=("parallel",),                # megacore: split batch tiles
            vmem_limit_bytes=64 * 1024 * 1024),
    )(y, bias, packed['w_qkv'], packed['b_qkv'], packed['wm'], packed['bm'],
      packed['g1'], packed['be1'], packed['w1'], packed['b1'],
      packed['w2'], packed['b2'], packed['g2'], packed['be2'])


# ----------------------------- pure-JAX references (eval mode) -----------------------------
def reference_forward(y, y_mask, params, n_heads, eps=LN_EPS):
    """Full-f32 reference with the exact PyTorch Encoder semantics."""
    B, S, H = y.shape
    dH = H // n_heads

    def lin(x, w, b):
        return x @ w.T + b

    def split(x):
        return x.reshape(B, S, n_heads, dH).transpose(0, 2, 1, 3)

    q = split(lin(y, params['wq'], params['bq']))
    k = split(lin(y, params['wk'], params['bk']))
    v = split(lin(y, params['wv'], params['bv']))

    scores = jnp.einsum('bhqd,bhkd->bhqk', q, k) / math.sqrt(dH)
    scores = jnp.where(y_mask, NEG_INF, scores)              # (B,1,1,S) broadcast
    att = jax.nn.softmax(scores, axis=-1)
    atted = jnp.einsum('bhqk,bhkd->bhqd', att, v)
    atted = atted.transpose(0, 2, 1, 3).reshape(B, S, H)
    atted = lin(atted, params['wm'], params['bm'])

    def layer_norm(x, g, b):
        mean = jnp.mean(x, axis=-1, keepdims=True)
        d = x - mean
        std = jnp.sqrt(jnp.sum(d * d, axis=-1, keepdims=True) / (H - 1))
        return g * d / (std + eps) + b

    x1 = layer_norm(y + atted, params['g1'], params['be1'])
    h1 = jnp.maximum(lin(x1, params['w1'], params['b1']), 0.0)
    ffn = lin(h1, params['w2'], params['b2'])
    return layer_norm(x1 + ffn, params['g2'], params['be2'])


def reference_forward_packed(y, y_mask, packed, n_heads, eps=LN_EPS):
    """Plain-JAX emulation of the kernel's numerics (bf16 MXU inputs, packed
    weights, additive mask bias) — validates kernel logic at tight tolerance."""
    B, S, H = y.shape
    d_h = H // n_heads
    bias = jnp.where(y_mask[:, 0, 0, :], NEG_INF, 0.0).astype(jnp.float32)[:, None, :]

    def bdot(a, w):
        return jnp.dot(a.astype(jnp.bfloat16), w, preferred_element_type=jnp.float32)

    y2 = y.reshape(B * S, H)
    qkv = bdot(y2, packed['w_qkv']) + packed['b_qkv']
    outs = []
    for h in range(n_heads):
        c = h * d_h
        q = qkv[:, c:c + d_h].reshape(B, S, d_h)
        k = qkv[:, H + c:H + c + d_h].reshape(B, S, d_h)
        v = qkv[:, 2 * H + c:2 * H + c + d_h].reshape(B, S, d_h)
        s = jnp.einsum('bqd,bkd->bqk', q.astype(jnp.bfloat16), k.astype(jnp.bfloat16),
                       preferred_element_type=jnp.float32) + bias
        s = s - jnp.max(s, axis=-1, keepdims=True)
        p = jnp.exp(s)
        p = p / jnp.sum(p, axis=-1, keepdims=True)
        outs.append(jnp.einsum('bqk,bkd->bqd', p.astype(jnp.bfloat16),
                               v.astype(jnp.bfloat16),
                               preferred_element_type=jnp.float32))
    atted = jnp.concatenate(outs, axis=-1).reshape(B * S, H)
    merged = bdot(atted, packed['wm']) + packed['bm']

    def layer_norm(x, g, b):
        mean = jnp.mean(x, axis=-1, keepdims=True)
        d = x - mean
        std = jnp.sqrt(jnp.sum(d * d, axis=-1, keepdims=True) / (H - 1))
        return g * d / (std + eps) + b

    x1 = layer_norm(y2 + merged, packed['g1'], packed['be1'])
    h1 = jnp.maximum(bdot(x1, packed['w1']) + packed['b1'], 0.0)
    ffn = bdot(h1, packed['w2']) + packed['b2']
    return layer_norm(x1 + ffn, packed['g2'], packed['be2']).reshape(B, S, H)


def init_params(key, H, FF):
    ks = jax.random.split(key, 16)
    n = lambda k, shp, s=0.1: s * jax.random.normal(k, shp, jnp.float32)
    return dict(
        wq=n(ks[0], (H, H)), bq=n(ks[1], (H,), 0.01),
        wk=n(ks[2], (H, H)), bk=n(ks[3], (H,), 0.01),
        wv=n(ks[4], (H, H)), bv=n(ks[5], (H,), 0.01),
        wm=n(ks[6], (H, H)), bm=n(ks[7], (H,), 0.01),
        g1=1.0 + n(ks[8], (H,)), be1=n(ks[9], (H,), 0.01),
        w1=n(ks[10], (FF, H)), b1=n(ks[11], (FF,), 0.01),
        w2=n(ks[12], (H, FF)), b2=n(ks[13], (H,), 0.01),
        g2=1.0 + n(ks[14], (H,)), be2=n(ks[15], (H,), 0.01),
    )


if __name__ == "__main__":
    # __C: HIDDEN_SIZE=32, MULTI_HEAD=4, FF_SIZE=128, DROPOUT_R=0.1 (eval mode)
    B, S, H, nH, FF = 2, 8, 32, 4, 128

    key = jax.random.PRNGKey(0)
    ky, kp = jax.random.split(key)
    y = jax.random.normal(ky, (B, S, H), jnp.float32)
    # zero a trailing token so the padding mask is actually exercised
    y = y.at[0, S - 1, :].set(0.0)
    # make_mask(y): True where the token is all-zero padding, shape (B, 1, 1, S)
    y_mask = (jnp.sum(jnp.abs(y), axis=-1) == 0.0)[:, None, None, :]

    params = init_params(kp, H, FF)
    packed = pack_params(params, nH)          # one-time weight packing (hoisted out of forward)

    out = encoder_forward(y, y_mask, packed, nH)
    out = jax.block_until_ready(out)
    assert out.shape == (B, S, H)

    # 1) Tight check of kernel logic against a plain-JAX emulation of the same
    #    bf16-MXU numerics (only approx-reciprocal / accumulation order differ).
    ref_bf16 = reference_forward_packed(y, y_mask, packed, nH)
    err_logic = float(jnp.max(jnp.abs(out - ref_bf16)))
    assert err_logic < 2e-2, f"kernel vs bf16-emulating reference: {err_logic}"

    # 2) Sanity check against the full-f32 PyTorch-semantics reference
    #    (bf16 MXU operands make ~1e-2 max-abs deviation expected).
    ref_f32 = reference_forward(y, y_mask, params, nH)
    err_full = float(jnp.max(jnp.abs(out - ref_f32)))
    assert err_full < 1e-1, f"kernel vs f32 reference: {err_full}"

    print("KERNEL_OK")
</pallas_src>

<mosaic_0001>
module attributes {stable_mosaic.version = 11 : i64} {
  func.func @_encoder_kernel(%arg0: i32, %arg1: memref<2x8x32xf32, #tpu.memory_space<vmem>>, %arg2: memref<2x1x8xf32, #tpu.memory_space<vmem>>, %arg3: memref<32x96xbf16, #tpu.memory_space<vmem>>, %arg4: memref<1x96xf32, #tpu.memory_space<vmem>>, %arg5: memref<32x32xbf16, #tpu.memory_space<vmem>>, %arg6: memref<1x32xf32, #tpu.memory_space<vmem>>, %arg7: memref<1x32xf32, #tpu.memory_space<vmem>>, %arg8: memref<1x32xf32, #tpu.memory_space<vmem>>, %arg9: memref<32x128xbf16, #tpu.memory_space<vmem>>, %arg10: memref<1x128xf32, #tpu.memory_space<vmem>>, %arg11: memref<128x32xbf16, #tpu.memory_space<vmem>>, %arg12: memref<1x32xf32, #tpu.memory_space<vmem>>, %arg13: memref<1x32xf32, #tpu.memory_space<vmem>>, %arg14: memref<1x32xf32, #tpu.memory_space<vmem>>, %arg15: memref<2x8x32xf32, #tpu.memory_space<vmem>>) attributes {dimension_semantics = [#tpu.dimension_semantics<parallel>], iteration_bounds = array<i64: 1>, scalar_prefetch = 0 : i64, scratch_operands = 0 : i64, tpu.core_type = #tpu.core_type<tc>, window_params = [{transform_indices = @transform_0, window_bounds = array<i64: 2, 8, 32>}, {transform_indices = @transform_1, window_bounds = array<i64: 2, 1, 8>}, {pipeline_mode = #tpu.pipeline_mode<synchronous>, transform_indices = @transform_2, window_bounds = array<i64: 32, 96>}, {pipeline_mode = #tpu.pipeline_mode<synchronous>, transform_indices = @transform_3, window_bounds = array<i64: 1, 96>}, {pipeline_mode = #tpu.pipeline_mode<synchronous>, transform_indices = @transform_4, window_bounds = array<i64: 32, 32>}, {pipeline_mode = #tpu.pipeline_mode<synchronous>, transform_indices = @transform_5, window_bounds = array<i64: 1, 32>}, {pipeline_mode = #tpu.pipeline_mode<synchronous>, transform_indices = @transform_6, window_bounds = array<i64: 1, 32>}, {pipeline_mode = #tpu.pipeline_mode<synchronous>, transform_indices = @transform_7, window_bounds = array<i64: 1, 32>}, {pipeline_mode = #tpu.pipeline_mode<synchronous>, transform_indices = @transform_8, window_bounds = array<i64: 32, 128>}, {pipeline_mode = #tpu.pipeline_mode<synchronous>, transform_indices = @transform_9, window_bounds = array<i64: 1, 128>}, {pipeline_mode = #tpu.pipeline_mode<synchronous>, transform_indices = @transform_10, window_bounds = array<i64: 128, 32>}, {pipeline_mode = #tpu.pipeline_mode<synchronous>, transform_indices = @transform_11, window_bounds = array<i64: 1, 32>}, {pipeline_mode = #tpu.pipeline_mode<synchronous>, transform_indices = @transform_12, window_bounds = array<i64: 1, 32>}, {pipeline_mode = #tpu.pipeline_mode<synchronous>, transform_indices = @transform_13, window_bounds = array<i64: 1, 32>}, {transform_indices = @transform_14, window_bounds = array<i64: 2, 8, 32>}]} {
    %c0 = arith.constant 0 : index
    %c0_0 = arith.constant 0 : index
    %c0_1 = arith.constant 0 : index
    %0 = vector.load %arg1[%c0, %c0_0, %c0_1] : memref<2x8x32xf32, #tpu.memory_space<vmem>>, vector<2x8x32xf32>
    %1 = vector.shape_cast %0 : vector<2x8x32xf32> to vector<16x32xf32>
    %c0_2 = arith.constant 0 : index
    %c0_3 = arith.constant 0 : index
    %c0_4 = arith.constant 0 : index
    %2 = vector.load %arg2[%c0_2, %c0_3, %c0_4] : memref<2x1x8xf32, #tpu.memory_space<vmem>>, vector<2x1x8xf32>
    %3 = arith.truncf %1 : vector<16x32xf32> to vector<16x32xbf16>
    %c0_5 = arith.constant 0 : index
    %c0_6 = arith.constant 0 : index
    %4 = vector.load %arg3[%c0_5, %c0_6] : memref<32x96xbf16, #tpu.memory_space<vmem>>, vector<32x96xbf16>
    %cst = arith.constant dense<0.000000e+00> : vector<16x96xf32>
    %5 = tpu.matmul %3, %4, %cst {dimension_numbers = #tpu.dot_dimension_numbers<[1], [0], [0], [1], [0, 0, 1, 1], [], []>} : vector<16x32xbf16>, vector<32x96xbf16>, vector<16x96xf32> -> vector<16x96xf32>
    %c0_7 = arith.constant 0 : index
    %c0_8 = arith.constant 0 : index
    %6 = vector.load %arg4[%c0_7, %c0_8] : memref<1x96xf32, #tpu.memory_space<vmem>>, vector<1x96xf32>
    %7 = vector.broadcast %6 : vector<1x96xf32> to vector<16x96xf32>
    %8 = arith.addf %5, %7 : vector<16x96xf32>
    %9 = vector.extract_strided_slice %8 {offsets = [0, 0], sizes = [16, 8], strides = [1, 1]} : vector<16x96xf32> to vector<16x8xf32>
    %10 = vector.shape_cast %9 : vector<16x8xf32> to vector<2x8x8xf32>
    %11 = vector.extract_strided_slice %8 {offsets = [0, 32], sizes = [16, 8], strides = [1, 1]} : vector<16x96xf32> to vector<16x8xf32>
    %12 = vector.shape_cast %11 : vector<16x8xf32> to vector<2x8x8xf32>
    %13 = vector.extract_strided_slice %8 {offsets = [0, 64], sizes = [16, 8], strides = [1, 1]} : vector<16x96xf32> to vector<16x8xf32>
    %14 = vector.shape_cast %13 : vector<16x8xf32> to vector<2x8x8xf32>
    %15 = arith.truncf %10 : vector<2x8x8xf32> to vector<2x8x8xbf16>
    %16 = arith.truncf %12 : vector<2x8x8xf32> to vector<2x8x8xbf16>
    "tpu.trace_start"() <{level = 10 : i32, message = "bqd,bkd->bqk"}> : () -> ()
    %cst_9 = arith.constant dense<0.000000e+00> : vector<2x8x8xf32>
    %17 = tpu.matmul %15, %16, %cst_9 {dimension_numbers = #tpu.dot_dimension_numbers<[2], [2], [1], [1], [0, 0, 0, 1, 1, 1], [0], [0]>} : vector<2x8x8xbf16>, vector<2x8x8xbf16>, vector<2x8x8xf32> -> vector<2x8x8xf32>
    "tpu.trace_stop"() : () -> ()
    %18 = vector.broadcast %2 : vector<2x1x8xf32> to vector<2x8x8xf32>
    %19 = arith.addf %17, %18 : vector<2x8x8xf32>
    %cst_10 = arith.constant dense<0xFF800000> : vector<2x8xf32>
    %20 = vector.multi_reduction <maximumf>, %19, %cst_10 [2] : vector<2x8x8xf32> to vector<2x8xf32>
    %21 = vector.shape_cast %20 : vector<2x8xf32> to vector<2x8x1xf32>
    %22 = vector.broadcast %21 : vector<2x8x1xf32> to vector<2x8x8xf32>
    %23 = arith.subf %19, %22 : vector<2x8x8xf32>
    %24 = math.exp %23 : vector<2x8x8xf32>
    %cst_11 = arith.constant dense<0.000000e+00> : vector<2x8xf32>
    %25 = vector.multi_reduction <add>, %24, %cst_11 [2] : vector<2x8x8xf32> to vector<2x8xf32>
    %26 = vector.shape_cast %25 : vector<2x8xf32> to vector<2x8x1xf32>
    %27 = tpu.reciprocal %26 {approx = true} : vector<2x8x1xf32> -> vector<2x8x1xf32>
    %28 = vector.broadcast %27 : vector<2x8x1xf32> to vector<2x8x8xf32>
    %29 = arith.mulf %24, %28 : vector<2x8x8xf32>
    %30 = arith.truncf %29 : vector<2x8x8xf32> to vector<2x8x8xbf16>
    %31 = arith.truncf %14 : vector<2x8x8xf32> to vector<2x8x8xbf16>
    "tpu.trace_start"() <{level = 10 : i32, message = "bqk,bkd->bqd"}> : () -> ()
    %cst_12 = arith.constant dense<0.000000e+00> : vector<2x8x8xf32>
    %32 = tpu.matmul %30, %31, %cst_12 {dimension_numbers = #tpu.dot_dimension_numbers<[2], [1], [1], [2], [0, 0, 0, 1, 1, 2], [0], [0]>} : vector<2x8x8xbf16>, vector<2x8x8xbf16>, vector<2x8x8xf32> -> vector<2x8x8xf32>
    "tpu.trace_stop"() : () -> ()
    %33 = vector.extract_strided_slice %8 {offsets = [0, 8], sizes = [16, 8], strides = [1, 1]} : vector<16x96xf32> to vector<16x8xf32>
    %34 = vector.shape_cast %33 : vector<16x8xf32> to vector<2x8x8xf32>
    %35 = vector.extract_strided_slice %8 {offsets = [0, 40], sizes = [16, 8], strides = [1, 1]} : vector<16x96xf32> to vector<16x8xf32>
    %36 = vector.shape_cast %35 : vector<16x8xf32> to vector<2x8x8xf32>
    %37 = vector.extract_strided_slice %8 {offsets = [0, 72], sizes = [16, 8], strides = [1, 1]} : vector<16x96xf32> to vector<16x8xf32>
    %38 = vector.shape_cast %37 : vector<16x8xf32> to vector<2x8x8xf32>
    %39 = arith.truncf %34 : vector<2x8x8xf32> to vector<2x8x8xbf16>
    %40 = arith.truncf %36 : vector<2x8x8xf32> to vector<2x8x8xbf16>
    "tpu.trace_start"() <{level = 10 : i32, message = "bqd,bkd->bqk"}> : () -> ()
    %cst_13 = arith.constant dense<0.000000e+00> : vector<2x8x8xf32>
    %41 = tpu.matmul %39, %40, %cst_13 {dimension_numbers = #tpu.dot_dimension_numbers<[2], [2], [1], [1], [0, 0, 0, 1, 1, 1], [0], [0]>} : vector<2x8x8xbf16>, vector<2x8x8xbf16>, vector<2x8x8xf32> -> vector<2x8x8xf32>
    "tpu.trace_stop"() : () -> ()
    %42 = vector.broadcast %2 : vector<2x1x8xf32> to vector<2x8x8xf32>
    %43 = arith.addf %41, %42 : vector<2x8x8xf32>
    %cst_14 = arith.constant dense<0xFF800000> : vector<2x8xf32>
    %44 = vector.multi_reduction <maximumf>, %43, %cst_14 [2] : vector<2x8x8xf32> to vector<2x8xf32>
    %45 = vector.shape_cast %44 : vector<2x8xf32> to vector<2x8x1xf32>
    %46 = vector.broadcast %45 : vector<2x8x1xf32> to vector<2x8x8xf32>
    %47 = arith.subf %43, %46 : vector<2x8x8xf32>
    %48 = math.exp %47 : vector<2x8x8xf32>
    %cst_15 = arith.constant dense<0.000000e+00> : vector<2x8xf32>
    %49 = vector.multi_reduction <add>, %48, %cst_15 [2] : vector<2x8x8xf32> to vector<2x8xf32>
    %50 = vector.shape_cast %49 : vector<2x8xf32> to vector<2x8x1xf32>
    %51 = tpu.reciprocal %50 {approx = true} : vector<2x8x1xf32> -> vector<2x8x1xf32>
    %52 = vector.broadcast %51 : vector<2x8x1xf32> to vector<2x8x8xf32>
    %53 = arith.mulf %48, %52 : vector<2x8x8xf32>
    %54 = arith.truncf %53 : vector<2x8x8xf32> to vector<2x8x8xbf16>
    %55 = arith.truncf %38 : vector<2x8x8xf32> to vector<2x8x8xbf16>
    "tpu.trace_start"() <{level = 10 : i32, message = "bqk,bkd->bqd"}> : () -> ()
    %cst_16 = arith.constant dense<0.000000e+00> : vector<2x8x8xf32>
    %56 = tpu.matmul %54, %55, %cst_16 {dimension_numbers = #tpu.dot_dimension_numbers<[2], [1], [1], [2], [0, 0, 0, 1, 1, 2], [0], [0]>} : vector<2x8x8xbf16>, vector<2x8x8xbf16>, vector<2x8x8xf32> -> vector<2x8x8xf32>
    "tpu.trace_stop"() : () -> ()
    %57 = vector.extract_strided_slice %8 {offsets = [0, 16], sizes = [16, 8], strides = [1, 1]} : vector<16x96xf32> to vector<16x8xf32>
    %58 = vector.shape_cast %57 : vector<16x8xf32> to vector<2x8x8xf32>
    %59 = vector.extract_strided_slice %8 {offsets = [0, 48], sizes = [16, 8], strides = [1, 1]} : vector<16x96xf32> to vector<16x8xf32>
    %60 = vector.shape_cast %59 : vector<16x8xf32> to vector<2x8x8xf32>
    %61 = vector.extract_strided_slice %8 {offsets = [0, 80], sizes = [16, 8], strides = [1, 1]} : vector<16x96xf32> to vector<16x8xf32>
    %62 = vector.shape_cast %61 : vector<16x8xf32> to vector<2x8x8xf32>
    %63 = arith.truncf %58 : vector<2x8x8xf32> to vector<2x8x8xbf16>
    %64 = arith.truncf %60 : vector<2x8x8xf32> to vector<2x8x8xbf16>
    "tpu.trace_start"() <{level = 10 : i32, message = "bqd,bkd->bqk"}> : () -> ()
    %cst_17 = arith.constant dense<0.000000e+00> : vector<2x8x8xf32>
    %65 = tpu.matmul %63, %64, %cst_17 {dimension_numbers = #tpu.dot_dimension_numbers<[2], [2], [1], [1], [0, 0, 0, 1, 1, 1], [0], [0]>} : vector<2x8x8xbf16>, vector<2x8x8xbf16>, vector<2x8x8xf32> -> vector<2x8x8xf32>
    "tpu.trace_stop"() : () -> ()
    %66 = vector.broadcast %2 : vector<2x1x8xf32> to vector<2x8x8xf32>
    %67 = arith.addf %65, %66 : vector<2x8x8xf32>
    %cst_18 = arith.constant dense<0xFF800000> : vector<2x8xf32>
    %68 = vector.multi_reduction <maximumf>, %67, %cst_18 [2] : vector<2x8x8xf32> to vector<2x8xf32>
    %69 = vector.shape_cast %68 : vector<2x8xf32> to vector<2x8x1xf32>
    %70 = vector.broadcast %69 : vector<2x8x1xf32> to vector<2x8x8xf32>
    %71 = arith.subf %67, %70 : vector<2x8x8xf32>
    %72 = math.exp %71 : vector<2x8x8xf32>
    %cst_19 = arith.constant dense<0.000000e+00> : vector<2x8xf32>
    %73 = vector.multi_reduction <add>, %72, %cst_19 [2] : vector<2x8x8xf32> to vector<2x8xf32>
    %74 = vector.shape_cast %73 : vector<2x8xf32> to vector<2x8x1xf32>
    %75 = tpu.reciprocal %74 {approx = true} : vector<2x8x1xf32> -> vector<2x8x1xf32>
    %76 = vector.broadcast %75 : vector<2x8x1xf32> to vector<2x8x8xf32>
    %77 = arith.mulf %72, %76 : vector<2x8x8xf32>
    %78 = arith.truncf %77 : vector<2x8x8xf32> to vector<2x8x8xbf16>
    %79 = arith.truncf %62 : vector<2x8x8xf32> to vector<2x8x8xbf16>
    "tpu.trace_start"() <{level = 10 : i32, message = "bqk,bkd->bqd"}> : () -> ()
    %cst_20 = arith.constant dense<0.000000e+00> : vector<2x8x8xf32>
    %80 = tpu.matmul %78, %79, %cst_20 {dimension_numbers = #tpu.dot_dimension_numbers<[2], [1], [1], [2], [0, 0, 0, 1, 1, 2], [0], [0]>} : vector<2x8x8xbf16>, vector<2x8x8xbf16>, vector<2x8x8xf32> -> vector<2x8x8xf32>
    "tpu.trace_stop"() : () -> ()
    %81 = vector.extract_strided_slice %8 {offsets = [0, 24], sizes = [16, 8], strides = [1, 1]} : vector<16x96xf32> to vector<16x8xf32>
    %82 = vector.shape_cast %81 : vector<16x8xf32> to vector<2x8x8xf32>
    %83 = vector.extract_strided_slice %8 {offsets = [0, 56], sizes = [16, 8], strides = [1, 1]} : vector<16x96xf32> to vector<16x8xf32>
    %84 = vector.shape_cast %83 : vector<16x8xf32> to vector<2x8x8xf32>
    %85 = vector.extract_strided_slice %8 {offsets = [0, 88], sizes = [16, 8], strides = [1, 1]} : vector<16x96xf32> to vector<16x8xf32>
    %86 = vector.shape_cast %85 : vector<16x8xf32> to vector<2x8x8xf32>
    %87 = arith.truncf %82 : vector<2x8x8xf32> to vector<2x8x8xbf16>
    %88 = arith.truncf %84 : vector<2x8x8xf32> to vector<2x8x8xbf16>
    "tpu.trace_start"() <{level = 10 : i32, message = "bqd,bkd->bqk"}> : () -> ()
    %cst_21 = arith.constant dense<0.000000e+00> : vector<2x8x8xf32>
    %89 = tpu.matmul %87, %88, %cst_21 {dimension_numbers = #tpu.dot_dimension_numbers<[2], [2], [1], [1], [0, 0, 0, 1, 1, 1], [0], [0]>} : vector<2x8x8xbf16>, vector<2x8x8xbf16>, vector<2x8x8xf32> -> vector<2x8x8xf32>
    "tpu.trace_stop"() : () -> ()
    %90 = vector.broadcast %2 : vector<2x1x8xf32> to vector<2x8x8xf32>
    %91 = arith.addf %89, %90 : vector<2x8x8xf32>
    %cst_22 = arith.constant dense<0xFF800000> : vector<2x8xf32>
    %92 = vector.multi_reduction <maximumf>, %91, %cst_22 [2] : vector<2x8x8xf32> to vector<2x8xf32>
    %93 = vector.shape_cast %92 : vector<2x8xf32> to vector<2x8x1xf32>
    %94 = vector.broadcast %93 : vector<2x8x1xf32> to vector<2x8x8xf32>
    %95 = arith.subf %91, %94 : vector<2x8x8xf32>
    %96 = math.exp %95 : vector<2x8x8xf32>
    %cst_23 = arith.constant dense<0.000000e+00> : vector<2x8xf32>
    %97 = vector.multi_reduction <add>, %96, %cst_23 [2] : vector<2x8x8xf32> to vector<2x8xf32>
    %98 = vector.shape_cast %97 : vector<2x8xf32> to vector<2x8x1xf32>
    %99 = tpu.reciprocal %98 {approx = true} : vector<2x8x1xf32> -> vector<2x8x1xf32>
    %100 = vector.broadcast %99 : vector<2x8x1xf32> to vector<2x8x8xf32>
    %101 = arith.mulf %96, %100 : vector<2x8x8xf32>
    %102 = arith.truncf %101 : vector<2x8x8xf32> to vector<2x8x8xbf16>
    %103 = arith.truncf %86 : vector<2x8x8xf32> to vector<2x8x8xbf16>
    "tpu.trace_start"() <{level = 10 : i32, message = "bqk,bkd->bqd"}> : () -> ()
    %cst_24 = arith.constant dense<0.000000e+00> : vector<2x8x8xf32>
    %104 = tpu.matmul %102, %103, %cst_24 {dimension_numbers = #tpu.dot_dimension_numbers<[2], [1], [1], [2], [0, 0, 0, 1, 1, 2], [0], [0]>} : vector<2x8x8xbf16>, vector<2x8x8xbf16>, vector<2x8x8xf32> -> vector<2x8x8xf32>
    "tpu.trace_stop"() : () -> ()
    %105 = tpu.concatenate %32, %56, %80, %104 in 2 : vector<2x8x8xf32>, vector<2x8x8xf32>, vector<2x8x8xf32>, vector<2x8x8xf32> -> vector<2x8x32xf32>
    %106 = vector.shape_cast %105 : vector<2x8x32xf32> to vector<16x32xf32>
    %107 = arith.truncf %106 : vector<16x32xf32> to vector<16x32xbf16>
    %c0_25 = arith.constant 0 : index
    %c0_26 = arith.constant 0 : index
    %108 = vector.load %arg5[%c0_25, %c0_26] : memref<32x32xbf16, #tpu.memory_space<vmem>>, vector<32x32xbf16>
    %cst_27 = arith.constant dense<0.000000e+00> : vector<16x32xf32>
    %109 = tpu.matmul %107, %108, %cst_27 {dimension_numbers = #tpu.dot_dimension_numbers<[1], [0], [0], [1], [0, 0, 1, 1], [], []>} : vector<16x32xbf16>, vector<32x32xbf16>, vector<16x32xf32> -> vector<16x32xf32>
    %c0_28 = arith.constant 0 : index
    %c0_29 = arith.constant 0 : index
    %110 = vector.load %arg6[%c0_28, %c0_29] : memref<1x32xf32, #tpu.memory_space<vmem>>, vector<1x32xf32>
    %111 = vector.broadcast %110 : vector<1x32xf32> to vector<16x32xf32>
    %112 = arith.addf %109, %111 : vector<16x32xf32>
    %113 = arith.addf %1, %112 : vector<16x32xf32>
    %c0_30 = arith.constant 0 : index
    %c0_31 = arith.constant 0 : index
    %114 = vector.load %arg7[%c0_30, %c0_31] : memref<1x32xf32, #tpu.memory_space<vmem>>, vector<1x32xf32>
    %c0_32 = arith.constant 0 : index
    %c0_33 = arith.constant 0 : index
    %115 = vector.load %arg8[%c0_32, %c0_33] : memref<1x32xf32, #tpu.memory_space<vmem>>, vector<1x32xf32>
    %cst_34 = arith.constant dense<0.000000e+00> : vector<16xf32>
    %116 = vector.multi_reduction <add>, %113, %cst_34 [1] : vector<16x32xf32> to vector<16xf32>
    %117 = vector.shape_cast %116 : vector<16xf32> to vector<16x1xf32>
    %cst_35 = arith.constant 3.200000e+01 : f32
    %118 = vector.broadcast %cst_35 : f32 to vector<16x1xf32>
    %119 = arith.divf %117, %118 : vector<16x1xf32>
    %120 = vector.broadcast %119 : vector<16x1xf32> to vector<16x32xf32>
    %121 = arith.subf %113, %120 : vector<16x32xf32>
    %122 = arith.mulf %121, %121 : vector<16x32xf32>
    %cst_36 = arith.constant dense<0.000000e+00> : vector<16xf32>
    %123 = vector.multi_reduction <add>, %122, %cst_36 [1] : vector<16x32xf32> to vector<16xf32>
    %124 = vector.shape_cast %123 : vector<16xf32> to vector<16x1xf32>
    %cst_37 = arith.constant 0.0322580636 : f32
    %125 = vector.broadcast %cst_37 : f32 to vector<16x1xf32>
    %126 = arith.mulf %124, %125 : vector<16x1xf32>
    %127 = math.sqrt %126 : vector<16x1xf32>
    %128 = vector.broadcast %114 : vector<1x32xf32> to vector<16x32xf32>
    %129 = arith.mulf %128, %121 : vector<16x32xf32>
    %cst_38 = arith.constant 9.99999997E-7 : f32
    %130 = vector.broadcast %cst_38 : f32 to vector<16x1xf32>
    %131 = arith.addf %127, %130 : vector<16x1xf32>
    %132 = vector.broadcast %131 : vector<16x1xf32> to vector<16x32xf32>
    %133 = arith.divf %129, %132 : vector<16x32xf32>
    %134 = vector.broadcast %115 : vector<1x32xf32> to vector<16x32xf32>
    %135 = arith.addf %133, %134 : vector<16x32xf32>
    %136 = arith.truncf %135 : vector<16x32xf32> to vector<16x32xbf16>
    %c0_39 = arith.constant 0 : index
    %c0_40 = arith.constant 0 : index
    %137 = vector.load %arg9[%c0_39, %c0_40] : memref<32x128xbf16, #tpu.memory_space<vmem>>, vector<32x128xbf16>
    %cst_41 = arith.constant dense<0.000000e+00> : vector<16x128xf32>
    %138 = tpu.matmul %136, %137, %cst_41 {dimension_numbers = #tpu.dot_dimension_numbers<[1], [0], [0], [1], [0, 0, 1, 1], [], []>} : vector<16x32xbf16>, vector<32x128xbf16>, vector<16x128xf32> -> vector<16x128xf32>
    %c0_42 = arith.constant 0 : index
    %c0_43 = arith.constant 0 : index
    %139 = vector.load %arg10[%c0_42, %c0_43] : memref<1x128xf32, #tpu.memory_space<vmem>>, vector<1x128xf32>
    %140 = vector.broadcast %139 : vector<1x128xf32> to vector<16x128xf32>
    %141 = arith.addf %138, %140 : vector<16x128xf32>
    %cst_44 = arith.constant 0.000000e+00 : f32
    %142 = vector.broadcast %cst_44 : f32 to vector<16x128xf32>
    %143 = arith.maximumf %141, %142 : vector<16x128xf32>
    %144 = arith.truncf %143 : vector<16x128xf32> to vector<16x128xbf16>
    %c0_45 = arith.constant 0 : index
    %c0_46 = arith.constant 0 : index
    %145 = vector.load %arg11[%c0_45, %c0_46] : memref<128x32xbf16, #tpu.memory_space<vmem>>, vector<128x32xbf16>
    %cst_47 = arith.constant dense<0.000000e+00> : vector<16x32xf32>
    %146 = tpu.matmul %144, %145, %cst_47 {dimension_numbers = #tpu.dot_dimension_numbers<[1], [0], [0], [1], [0, 0, 1, 1], [], []>} : vector<16x128xbf16>, vector<128x32xbf16>, vector<16x32xf32> -> vector<16x32xf32>
    %c0_48 = arith.constant 0 : index
    %c0_49 = arith.constant 0 : index
    %147 = vector.load %arg12[%c0_48, %c0_49] : memref<1x32xf32, #tpu.memory_space<vmem>>, vector<1x32xf32>
    %148 = vector.broadcast %147 : vector<1x32xf32> to vector<16x32xf32>
    %149 = arith.addf %146, %148 : vector<16x32xf32>
    %150 = arith.addf %135, %149 : vector<16x32xf32>
    %c0_50 = arith.constant 0 : index
    %c0_51 = arith.constant 0 : index
    %151 = vector.load %arg13[%c0_50, %c0_51] : memref<1x32xf32, #tpu.memory_space<vmem>>, vector<1x32xf32>
    %c0_52 = arith.constant 0 : index
    %c0_53 = arith.constant 0 : index
    %152 = vector.load %arg14[%c0_52, %c0_53] : memref<1x32xf32, #tpu.memory_space<vmem>>, vector<1x32xf32>
    %cst_54 = arith.constant dense<0.000000e+00> : vector<16xf32>
    %153 = vector.multi_reduction <add>, %150, %cst_54 [1] : vector<16x32xf32> to vector<16xf32>
    %154 = vector.shape_cast %153 : vector<16xf32> to vector<16x1xf32>
    %cst_55 = arith.constant 3.200000e+01 : f32
    %155 = vector.broadcast %cst_55 : f32 to vector<16x1xf32>
    %156 = arith.divf %154, %155 : vector<16x1xf32>
    %157 = vector.broadcast %156 : vector<16x1xf32> to vector<16x32xf32>
    %158 = arith.subf %150, %157 : vector<16x32xf32>
    %159 = arith.mulf %158, %158 : vector<16x32xf32>
    %cst_56 = arith.constant dense<0.000000e+00> : vector<16xf32>
    %160 = vector.multi_reduction <add>, %159, %cst_56 [1] : vector<16x32xf32> to vector<16xf32>
    %161 = vector.shape_cast %160 : vector<16xf32> to vector<16x1xf32>
    %cst_57 = arith.constant 0.0322580636 : f32
    %162 = vector.broadcast %cst_57 : f32 to vector<16x1xf32>
    %163 = arith.mulf %161, %162 : vector<16x1xf32>
    %164 = math.sqrt %163 : vector<16x1xf32>
    %165 = vector.broadcast %151 : vector<1x32xf32> to vector<16x32xf32>
    %166 = arith.mulf %165, %158 : vector<16x32xf32>
    %cst_58 = arith.constant 9.99999997E-7 : f32
    %167 = vector.broadcast %cst_58 : f32 to vector<16x1xf32>
    %168 = arith.addf %164, %167 : vector<16x1xf32>
    %169 = vector.broadcast %168 : vector<16x1xf32> to vector<16x32xf32>
    %170 = arith.divf %166, %169 : vector<16x32xf32>
    %171 = vector.broadcast %152 : vector<1x32xf32> to vector<16x32xf32>
    %172 = arith.addf %170, %171 : vector<16x32xf32>
    %173 = vector.shape_cast %172 : vector<16x32xf32> to vector<2x8x32xf32>
    %c0_59 = arith.constant 0 : index
    %c0_60 = arith.constant 0 : index
    %c0_61 = arith.constant 0 : index
    %174 = vector.load %arg15[%c0_59, %c0_60, %c0_61] : memref<2x8x32xf32, #tpu.memory_space<vmem>>, vector<2x8x32xf32>
    tpu.vector_store %arg15[%c0_59, %c0_60, %c0_61], %173 {strides = array<i32>} : memref<2x8x32xf32, #tpu.memory_space<vmem>>, vector<2x8x32xf32>,
    return
  }
  func.func @transform_0(%arg0: i32) -> (i32, i32, i32) {
    %c0_i32 = arith.constant 0 : i32
    %c0_i32_0 = arith.constant 0 : i32
    %c0_i32_1 = arith.constant 0 : i32
    return %arg0, %c0_i32, %c0_i32_0 : i32, i32, i32
  }
  func.func @transform_1(%arg0: i32) -> (i32, i32, i32) {
    %c0_i32 = arith.constant 0 : i32
    %c0_i32_0 = arith.constant 0 : i32
    %c0_i32_1 = arith.constant 0 : i32
    return %arg0, %c0_i32, %c0_i32_0 : i32, i32, i32
  }
  func.func @transform_2(%arg0: i32) -> (i32, i32) {
    %c0_i32 = arith.constant 0 : i32
    %c0_i32_0 = arith.constant 0 : i32
    %c0_i32_1 = arith.constant 0 : i32
    return %c0_i32, %c0_i32_0 : i32, i32
  }
  func.func @transform_3(%arg0: i32) -> (i32, i32) {
    %c0_i32 = arith.constant 0 : i32
    %c0_i32_0 = arith.constant 0 : i32
    %c0_i32_1 = arith.constant 0 : i32
    return %c0_i32, %c0_i32_0 : i32, i32
  }
  func.func @transform_4(%arg0: i32) -> (i32, i32) {
    %c0_i32 = arith.constant 0 : i32
    %c0_i32_0 = arith.constant 0 : i32
    %c0_i32_1 = arith.constant 0 : i32
    return %c0_i32, %c0_i32_0 : i32, i32
  }
  func.func @transform_5(%arg0: i32) -> (i32, i32) {
    %c0_i32 = arith.constant 0 : i32
    %c0_i32_0 = arith.constant 0 : i32
    %c0_i32_1 = arith.constant 0 : i32
    return %c0_i32, %c0_i32_0 : i32, i32
  }
  func.func @transform_6(%arg0: i32) -> (i32, i32) {
    %c0_i32 = arith.constant 0 : i32
    %c0_i32_0 = arith.constant 0 : i32
    %c0_i32_1 = arith.constant 0 : i32
    return %c0_i32, %c0_i32_0 : i32, i32
  }
  func.func @transform_7(%arg0: i32) -> (i32, i32) {
    %c0_i32 = arith.constant 0 : i32
    %c0_i32_0 = arith.constant 0 : i32
    %c0_i32_1 = arith.constant 0 : i32
    return %c0_i32, %c0_i32_0 : i32, i32
  }
  func.func @transform_8(%arg0: i32) -> (i32, i32) {
    %c0_i32 = arith.constant 0 : i32
    %c0_i32_0 = arith.constant 0 : i32
    %c0_i32_1 = arith.constant 0 : i32
    return %c0_i32, %c0_i32_0 : i32, i32
  }
  func.func @transform_9(%arg0: i32) -> (i32, i32) {
    %c0_i32 = arith.constant 0 : i32
    %c0_i32_0 = arith.constant 0 : i32
    %c0_i32_1 = arith.constant 0 : i32
    return %c0_i32, %c0_i32_0 : i32, i32
  }
  func.func @transform_10(%arg0: i32) -> (i32, i32) {
    %c0_i32 = arith.constant 0 : i32
    %c0_i32_0 = arith.constant 0 : i32
    %c0_i32_1 = arith.constant 0 : i32
    return %c0_i32, %c0_i32_0 : i32, i32
  }
  func.func @transform_11(%arg0: i32) -> (i32, i32) {
    %c0_i32 = arith.constant 0 : i32
    %c0_i32_0 = arith.constant 0 : i32
    %c0_i32_1 = arith.constant 0 : i32
    return %c0_i32, %c0_i32_0 : i32, i32
  }
  func.func @transform_12(%arg0: i32) -> (i32, i32) {
    %c0_i32 = arith.constant 0 : i32
    %c0_i32_0 = arith.constant 0 : i32
    %c0_i32_1 = arith.constant 0 : i32
    return %c0_i32, %c0_i32_0 : i32, i32
  }
  func.func @transform_13(%arg0: i32) -> (i32, i32) {
    %c0_i32 = arith.constant 0 : i32
    %c0_i32_0 = arith.constant 0 : i32
    %c0_i32_1 = arith.constant 0 : i32
    return %c0_i32, %c0_i32_0 : i32, i32
  }
  func.func @transform_14(%arg0: i32) -> (i32, i32, i32) {
    %c0_i32 = arith.constant 0 : i32
    %c0_i32_0 = arith.constant 0 : i32
    %c0_i32_1 = arith.constant 0 : i32
    return %arg0, %c0_i32, %c0_i32_0 : i32, i32, i32
  }
}

</mosaic_0001>

<llo_original>
// kernel: tpu_custom_call.1
$region0: #{tpu_custom_call.1}
  #allocation0 [shape = 'u32[]', space=smem, size = 0x4, offset = 0x4, fixed_abs, tag = 'smem constant byte address 0x4 - core index']
  #allocation1 [shape = 'u32[144,128]{1,0:T(1,128)}', space=vmem, size = 0x12000, scoped, tag = 'internal scratch']
  %s0 = inlined_call_operand.hbm [shape: f32[2,8,32], index: 0, kind: input, shape index: {}]
  %s1 = inlined_call_operand.hbm [shape: f32[2,1,8], index: 1, kind: input, shape index: {}]
  %s2 = inlined_call_operand.hbm [shape: bf16[32,96], index: 2, kind: input, shape index: {}]
  %s3 = inlined_call_operand.hbm [shape: f32[1,96], index: 3, kind: input, shape index: {}]
  %s4 = inlined_call_operand.hbm [shape: bf16[32,32], index: 4, kind: input, shape index: {}]
  %s5 = inlined_call_operand.hbm [shape: f32[1,32], index: 5, kind: input, shape index: {}]
  %s6 = inlined_call_operand.hbm [shape: f32[1,32], index: 6, kind: input, shape index: {}]
  %s7 = inlined_call_operand.hbm [shape: f32[1,32], index: 7, kind: input, shape index: {}]
  %s8 = inlined_call_operand.hbm [shape: bf16[32,128], index: 8, kind: input, shape index: {}]
  %s9 = inlined_call_operand.hbm [shape: f32[1,128], index: 9, kind: input, shape index: {}]
  %s10 = inlined_call_operand.hbm [shape: bf16[128,32], index: 10, kind: input, shape index: {}]
  %s11 = inlined_call_operand.hbm [shape: f32[1,32], index: 11, kind: input, shape index: {}]
  %s12 = inlined_call_operand.hbm [shape: f32[1,32], index: 12, kind: input, shape index: {}]
  %s13 = inlined_call_operand.hbm [shape: f32[1,32], index: 13, kind: input, shape index: {}]
  %s14 = inlined_call_operand.hbm [shape: f32[2,8,32], index: 14, kind: output, shape index: {}]
  %s15 = sld [smem:[#allocation0]]
  $region122: #{tpu_custom_call.1} parent=0
    _
  %s17 = ssub.s32 1, %s15
  %s18 = scalar_select 0, %s17, %s15
  $region1: #{tpu_custom_call.1} parent=0
    #allocation2 [shape = 'u8[8192]{0}', space=vmem, size = 0x2000, scoped, tag = 'input window, operand 0, single buffered']
    #allocation3 [shape = 's32[1]{0}', space=sflag, size = 0x4, scoped, tag = 'scoped memory for tpu_custom_call.1']
    #allocation4 [shape = 's32[1]{0}', space=sflag, size = 0x4, scoped, tag = 'scoped memory for tpu_custom_call.1']
    #allocation5 [shape = 'u8[1024]{0}', space=vmem, size = 0x400, scoped, tag = 'input window, operand 1, single buffered']
    #allocation6 [shape = 's32[1]{0}', space=sflag, size = 0x4, scoped, tag = 'scoped memory for tpu_custom_call.1']
    #allocation7 [shape = 'u8[8192]{0}', space=vmem, size = 0x2000, scoped, tag = 'input window, operand 2, single buffered']
    #allocation8 [shape = 'u8[512]{0}', space=vmem, size = 0x400, scoped, tag = 'input window, operand 3, single buffered']
    #allocation9 [shape = 's32[1]{0}', space=sflag, size = 0x4, scoped, tag = 'scoped memory for tpu_custom_call.1']
    #allocation10 [shape = 'u8[8192]{0}', space=vmem, size = 0x2000, scoped, tag = 'input window, operand 4, single buffered']
    #allocation11 [shape = 'u8[512]{0}', space=vmem, size = 0x400, scoped, tag = 'input window, operand 5, single buffered']
    #allocation12 [shape = 's32[1]{0}', space=sflag, size = 0x4, scoped, tag = 'scoped memory for tpu_custom_call.1']
    #allocation13 [shape = 'u8[512]{0}', space=vmem, size = 0x400, scoped, tag = 'input window, operand 6, single buffered']
    #allocation14 [shape = 'u8[512]{0}', space=vmem, size = 0x400, scoped, tag = 'input window, operand 7, single buffered']
    #allocation15 [shape = 's32[1]{0}', space=sflag, size = 0x4, scoped, tag = 'scoped memory for tpu_custom_call.1']
    #allocation16 [shape = 'u8[8192]{0}', space=vmem, size = 0x2000, scoped, tag = 'input window, operand 8, single buffered']
    #allocation17 [shape = 'u8[512]{0}', space=vmem, size = 0x400, scoped, tag = 'input window, operand 9, single buffered']
    #allocation18 [shape = 's32[1]{0}', space=sflag, size = 0x4, scoped, tag = 'scoped memory for tpu_custom_call.1']
    #allocation19 [shape = 'u8[32768]{0}', space=vmem, size = 0x8000, scoped, tag = 'input window, operand 10, single buffered']
    #allocation20 [shape = 'u8[512]{0}', space=vmem, size = 0x400, scoped, tag = 'input window, operand 11, single buffered']
    #allocation21 [shape = 's32[1]{0}', space=sflag, size = 0x4, scoped, tag = 'scoped memory for tpu_custom_call.1']
    #allocation22 [shape = 'u8[512]{0}', space=vmem, size = 0x400, scoped, tag = 'input window, operand 12, single buffered']
    #allocation23 [shape = 'u8[512]{0}', space=vmem, size = 0x400, scoped, tag = 'input window, operand 13, single buffered']
    #allocation24 [shape = 's32[1]{0}', space=sflag, size = 0x4, scoped, tag = 'scoped memory for tpu_custom_call.1']
    #allocation25 [shape = 'u8[8192]{0}', space=vmem, size = 0x2000, scoped, tag = 'output window, operand 0, single buffered']
    %19 = vsyncpa [#allocation3], 0
    %20 = vsyncpa [#allocation6], 0
    %21 = vsyncpa [#allocation9], 0
    %22 = vsyncpa [#allocation12], 0
    %23 = vsyncpa [#allocation15], 0
    %24 = vsyncpa [#allocation18], 0
    %25 = vsyncpa [#allocation21], 0
    %26 = vsyncpa [#allocation24], 0
    %27 = vsyncpa [#allocation4], 0
    // Predicated region
    $region2: #{tpu_custom_call.1} parent=1 // pred_check
      _
    $region3: #{tpu_custom_call.1} parent=1 // pred_check_branch
      %29 = sbr.rel (0) target = $region5
    $region4: #{tpu_custom_call.1} parent=1 // pred_region
      %s31 = ssub.s32 256, 256
      %32 = vsyncadd [#allocation3], %s31
      %s33 = sshll.u32 [#allocation2], 4
      %s34 = int_to_ptr.vmem [resolvable:$true] %s33
      %39 = dma.hbm_to_vmem [thread:$0]  %s0, 256, %s34, [#allocation3], 128, 128, 8
    $region5: #{tpu_custom_call.1} parent=1 // pred_fallthru
      _
    // Predicated region
    $region6: #{tpu_custom_call.1} parent=1 // pred_check
      _
    $region7: #{tpu_custom_call.1} parent=1 // pred_check_branch
      %41 = sbr.rel (0) target = $region9
    $region8: #{tpu_custom_call.1} parent=1 // pred_region
      %s43 = ssub.s32 32, 32
      %44 = vsyncadd [#allocation6], %s43
      %s45 = sshll.u32 [#allocation5], 4
      %s46 = int_to_ptr.vmem [resolvable:$true] %s45
      %51 = dma.hbm_to_vmem [thread:$0]  %s1, 32, %s46, [#allocation6], 16, 16, 1
    $region9: #{tpu_custom_call.1} parent=1 // pred_fallthru
      _
    // Predicated region
    $region10: #{tpu_custom_call.1} parent=1 // pred_check
      _
    $region11: #{tpu_custom_call.1} parent=1 // pred_check_branch
      %53 = sbr.rel (0) target = $region13
    $region12: #{tpu_custom_call.1} parent=1 // pred_region
      %s55 = ssub.s32 256, 256
      %56 = vsyncadd [#allocation6], %s55
      %s57 = sshll.u32 [#allocation7], 4
      %s58 = int_to_ptr.vmem [resolvable:$true] %s57
      %63 = dma.hbm_to_vmem [thread:$0]  %s2, 256, %s58, [#allocation6], 64, 64, 4
    $region13: #{tpu_custom_call.1} parent=1 // pred_fallthru
      _
    // Predicated region
    $region14: #{tpu_custom_call.1} parent=1 // pred_check
      _
    $region15: #{tpu_custom_call.1} parent=1 // pred_check_branch
      %65 = sbr.rel (0) target = $region17
    $region16: #{tpu_custom_call.1} parent=1 // pred_region
      %s67 = ssub.s32 16, 16
      %68 = vsyncadd [#allocation9], %s67
      %s70 = sshll.u32 [#allocation8], 4
      %s71 = int_to_ptr.vmem [resolvable:$true] %s70
      %73 = dma.hbm_to_vmem [thread:$0]  %s3, 16, %s71, [#allocation9]
    $region17: #{tpu_custom_call.1} parent=1 // pred_fallthru
      _
    // Predicated region
    $region18: #{tpu_custom_call.1} parent=1 // pred_check
      _
    $region19: #{tpu_custom_call.1} parent=1 // pred_check_branch
      %75 = sbr.rel (0) target = $region21
    $region20: #{tpu_custom_call.1} parent=1 // pred_region
      %s77 = ssub.s32 256, 256
      %78 = vsyncadd [#allocation9], %s77
      %s79 = sshll.u32 [#allocation10], 4
      %s80 = int_to_ptr.vmem [resolvable:$true] %s79
      %85 = dma.hbm_to_vmem [thread:$0]  %s4, 256, %s80, [#allocation9], 64, 64, 4
    $region21: #{tpu_custom_call.1} parent=1 // pred_fallthru
      _
    // Predicated region
    $region22: #{tpu_custom_call.1} parent=1 // pred_check
      _
    $region23: #{tpu_custom_call.1} parent=1 // pred_check_branch
      %87 = sbr.rel (0) target = $region25
    $region24: #{tpu_custom_call.1} parent=1 // pred_region
      %s89 = ssub.s32 16, 16
      %90 = vsyncadd [#allocation12], %s89
      %s92 = sshll.u32 [#allocation11], 4
      %s93 = int_to_ptr.vmem [resolvable:$true] %s92
      %95 = dma.hbm_to_vmem [thread:$0]  %s5, 16, %s93, [#allocation12]
    $region25: #{tpu_custom_call.1} parent=1 // pred_fallthru
      _
    // Predicated region
    $region26: #{tpu_custom_call.1} parent=1 // pred_check
      _
    $region27: #{tpu_custom_call.1} parent=1 // pred_check_branch
      %97 = sbr.rel (0) target = $region29
    $region28: #{tpu_custom_call.1} parent=1 // pred_region
      %s99 = ssub.s32 16, 16
      %100 = vsyncadd [#allocation12], %s99
      %s102 = sshll.u32 [#allocation13], 4
      %s103 = int_to_ptr.vmem [resolvable:$true] %s102
      %105 = dma.hbm_to_vmem [thread:$0]  %s6, 16, %s103, [#allocation12]
    $region29: #{tpu_custom_call.1} parent=1 // pred_fallthru
      _
    // Predicated region
    $region30: #{tpu_custom_call.1} parent=1 // pred_check
      _
    $region31: #{tpu_custom_call.1} parent=1 // pred_check_branch
      %107 = sbr.rel (0) target = $region33
    $region32: #{tpu_custom_call.1} parent=1 // pred_region
      %s109 = ssub.s32 16, 16
      %110 = vsyncadd [#allocation15], %s109
      %s112 = sshll.u32 [#allocation14], 4
      %s113 = int_to_ptr.vmem [resolvable:$true] %s112
      %115 = dma.hbm_to_vmem [thread:$0]  %s7, 16, %s113, [#allocation15]
    $region33: #{tpu_custom_call.1} parent=1 // pred_fallthru
      _
    // Predicated region
    $region34: #{tpu_custom_call.1} parent=1 // pred_check
      _
    $region35: #{tpu_custom_call.1} parent=1 // pred_check_branch
      %117 = sbr.rel (0) target = $region37
    $region36: #{tpu_custom_call.1} parent=1 // pred_region
      %s119 = ssub.s32 256, 256
      %120 = vsyncadd [#allocation15], %s119
      %s121 = sshll.u32 [#allocation16], 4
      %s122 = int_to_ptr.vmem [resolvable:$true] %s121
      %127 = dma.hbm_to_vmem [thread:$0]  %s8, 256, %s122, [#allocation15], 64, 64, 4
    $region37: #{tpu_custom_call.1} parent=1 // pred_fallthru
      _
    // Predicated region
    $region38: #{tpu_custom_call.1} parent=1 // pred_check
      _
    $region39: #{tpu_custom_call.1} parent=1 // pred_check_branch
      %129 = sbr.rel (0) target = $region41
    $region40: #{tpu_custom_call.1} parent=1 // pred_region
      %s131 = ssub.s32 16, 16
      %132 = vsyncadd [#allocation18], %s131
      %s134 = sshll.u32 [#allocation17], 4
      %s135 = int_to_ptr.vmem [resolvable:$true] %s134
      %137 = dma.hbm_to_vmem [thread:$0]  %s9, 16, %s135, [#allocation18]
    $region41: #{tpu_custom_call.1} parent=1 // pred_fallthru
      _
    // Predicated region
    $region42: #{tpu_custom_call.1} parent=1 // pred_check
      _
    $region43: #{tpu_custom_call.1} parent=1 // pred_check_branch
      %139 = sbr.rel (0) target = $region45
    $region44: #{tpu_custom_call.1} parent=1 // pred_region
      %s141 = ssub.s32 1024, 1024
      %142 = vsyncadd [#allocation18], %s141
      %s143 = sshll.u32 [#allocation19], 4
      %s144 = int_to_ptr.vmem [resolvable:$true] %s143
      %149 = dma.hbm_to_vmem [thread:$0]  %s10, 1024, %s144, [#allocation18], 64, 64, 4
    $region45: #{tpu_custom_call.1} parent=1 // pred_fallthru
      _
    // Predicated region
    $region46: #{tpu_custom_call.1} parent=1 // pred_check
      _
    $region47: #{tpu_custom_call.1} parent=1 // pred_check_branch
      %151 = sbr.rel (0) target = $region49
    $region48: #{tpu_custom_call.1} parent=1 // pred_region
      %s153 = ssub.s32 16, 16
      %154 = vsyncadd [#allocation21], %s153
      %s156 = sshll.u32 [#allocation20], 4
      %s157 = int_to_ptr.vmem [resolvable:$true] %s156
      %159 = dma.hbm_to_vmem [thread:$0]  %s11, 16, %s157, [#allocation21]
    $region49: #{tpu_custom_call.1} parent=1 // pred_fallthru
      _
    // Predicated region
    $region50: #{tpu_custom_call.1} parent=1 // pred_check
      _
    $region51: #{tpu_custom_call.1} parent=1 // pred_check_branch
      %161 = sbr.rel (0) target = $region53
    $region52: #{tpu_custom_call.1} parent=1 // pred_region
      %s163 = ssub.s32 16, 16
      %164 = vsyncadd [#allocation21], %s163
      %s166 = sshll.u32 [#allocation22], 4
      %s167 = int_to_ptr.vmem [resolvable:$true] %s166
      %169 = dma.hbm_to_vmem [thread:$0]  %s12, 16, %s167, [#allocation21]
    $region53: #{tpu_custom_call.1} parent=1 // pred_fallthru
      _
    // Predicated region
    $region54: #{tpu_custom_call.1} parent=1 // pred_check
      _
    $region55: #{tpu_custom_call.1} parent=1 // pred_check_branch
      %171 = sbr.rel (0) target = $region57
    $region56: #{tpu_custom_call.1} parent=1 // pred_region
      %s173 = ssub.s32 16, 16
      %174 = vsyncadd [#allocation24], %s173
      %s176 = sshll.u32 [#allocation23], 4
      %s177 = int_to_ptr.vmem [resolvable:$true] %s176
      %179 = dma.hbm_to_vmem [thread:$0]  %s13, 16, %s177, [#allocation24]
    $region57: #{tpu_custom_call.1} parent=1 // pred_fallthru
      _
    // Predicated region
    $region58: #{tpu_custom_call.1} parent=1 // pred_check
      _
    $region59: #{tpu_custom_call.1} parent=1 // pred_check_branch
      %181 = sbr.rel (0) target = $region61
    $region60: #{tpu_custom_call.1} parent=1 // pred_region
      %182 = dma.done [#allocation3], 256
    $region61: #{tpu_custom_call.1} parent=1 // pred_fallthru
      _
    // Predicated region
    $region62: #{tpu_custom_call.1} parent=1 // pred_check
      _
    $region63: #{tpu_custom_call.1} parent=1 // pred_check_branch
      %184 = sbr.rel (0) target = $region65
    $region64: #{tpu_custom_call.1} parent=1 // pred_region
      %185 = dma.done [#allocation6], 32
    $region65: #{tpu_custom_call.1} parent=1 // pred_fallthru
      _
    // Predicated region
    $region66: #{tpu_custom_call.1} parent=1 // pred_check
      _
    $region67: #{tpu_custom_call.1} parent=1 // pred_check_branch
      %187 = sbr.rel (0) target = $region69
    $region68: #{tpu_custom_call.1} parent=1 // pred_region
      %188 = dma.done [#allocation6], 256
    $region69: #{tpu_custom_call.1} parent=1 // pred_fallthru
      _
    // Predicated region
    $region70: #{tpu_custom_call.1} parent=1 // pred_check
      _
    $region71: #{tpu_custom_call.1} parent=1 // pred_check_branch
      %190 = sbr.rel (0) target = $region73
    $region72: #{tpu_custom_call.1} parent=1 // pred_region
      %191 = dma.done [#allocation9], 16
    $region73: #{tpu_custom_call.1} parent=1 // pred_fallthru
      _
    // Predicated region
    $region74: #{tpu_custom_call.1} parent=1 // pred_check
      _
    $region75: #{tpu_custom_call.1} parent=1 // pred_check_branch
      %193 = sbr.rel (0) target = $region77
    $region76: #{tpu_custom_call.1} parent=1 // pred_region
      %194 = dma.done [#allocation9], 256
    $region77: #{tpu_custom_call.1} parent=1 // pred_fallthru
      _
    // Predicated region
    $region78: #{tpu_custom_call.1} parent=1 // pred_check
      _
    $region79: #{tpu_custom_call.1} parent=1 // pred_check_branch
      %196 = sbr.rel (0) target = $region81
    $region80: #{tpu_custom_call.1} parent=1 // pred_region
      %197 = dma.done [#allocation12], 16
    $region81: #{tpu_custom_call.1} parent=1 // pred_fallthru
      _
    // Predicated region
    $region82: #{tpu_custom_call.1} parent=1 // pred_check
      _
    $region83: #{tpu_custom_call.1} parent=1 // pred_check_branch
      %199 = sbr.rel (0) target = $region85
    $region84: #{tpu_custom_call.1} parent=1 // pred_region
      %200 = dma.done [#allocation12], 16
    $region85: #{tpu_custom_call.1} parent=1 // pred_fallthru
      _
    // Predicated region
    $region86: #{tpu_custom_call.1} parent=1 // pred_check
      _
    $region87: #{tpu_custom_call.1} parent=1 // pred_check_branch
      %202 = sbr.rel (0) target = $region89
    $region88: #{tpu_custom_call.1} parent=1 // pred_region
      %203 = dma.done [#allocation15], 16
    $region89: #{tpu_custom_call.1} parent=1 // pred_fallthru
      _
    // Predicated region
    $region90: #{tpu_custom_call.1} parent=1 // pred_check
      _
    $region91: #{tpu_custom_call.1} parent=1 // pred_check_branch
      %205 = sbr.rel (0) target = $region93
    $region92: #{tpu_custom_call.1} parent=1 // pred_region
      %206 = dma.done [#allocation15], 256
    $region93: #{tpu_custom_call.1} parent=1 // pred_fallthru
      _
    // Predicated region
    $region94: #{tpu_custom_call.1} parent=1 // pred_check
      _
    $region95: #{tpu_custom_call.1} parent=1 // pred_check_branch
      %208 = sbr.rel (0) target = $region97
    $region96: #{tpu_custom_call.1} parent=1 // pred_region
      %209 = dma.done [#allocation18], 16
    $region97: #{tpu_custom_call.1} parent=1 // pred_fallthru
      _
    // Predicated region
    $region98: #{tpu_custom_call.1} parent=1 // pred_check
      _
    $region99: #{tpu_custom_call.1} parent=1 // pred_check_branch
      %211 = sbr.rel (0) target = $region101
    $region100: #{tpu_custom_call.1} parent=1 // pred_region
      %212 = dma.done [#allocation18], 1024
    $region101: #{tpu_custom_call.1} parent=1 // pred_fallthru
      _
    // Predicated region
    $region102: #{tpu_custom_call.1} parent=1 // pred_check
      _
    $region103: #{tpu_custom_call.1} parent=1 // pred_check_branch
      %214 = sbr.rel (0) target = $region105
    $region104: #{tpu_custom_call.1} parent=1 // pred_region
      %215 = dma.done [#allocation21], 16
    $region105: #{tpu_custom_call.1} parent=1 // pred_fallthru
      _
    // Predicated region
    $region106: #{tpu_custom_call.1} parent=1 // pred_check
      _
    $region107: #{tpu_custom_call.1} parent=1 // pred_check_branch
      %217 = sbr.rel (0) target = $region109
    $region108: #{tpu_custom_call.1} parent=1 // pred_region
      %218 = dma.done [#allocation21], 16
    $region109: #{tpu_custom_call.1} parent=1 // pred_fallthru
      _
    // Predicated region
    $region110: #{tpu_custom_call.1} parent=1 // pred_check
      _
    $region111: #{tpu_custom_call.1} parent=1 // pred_check_branch
      %220 = sbr.rel (0) target = $region113
    $region112: #{tpu_custom_call.1} parent=1 // pred_region
      %221 = dma.done [#allocation24], 16
    $region113: #{tpu_custom_call.1} parent=1 // pred_fallthru
      _
    %v223 = vld [vmem:[#allocation2] sm:$0xff]
    %v224 = vld [vmem:[#allocation2 + $0x8] sm:$0xff]
    %v225 = vld [vmem:[#allocation5] sm:$0x1]
    %v226 = vld [vmem:[#allocation5 + $0x1] sm:$0x1]
    %v227 = vpack.c.bf16 %v224, %v223
    %v228 = vld [vmem:[#allocation7] sm:$0xf]
    %v229 = vld [vmem:[#allocation7 + $0x4] sm:$0xf]
    %v230 = vld [vmem:[#allocation7 + $0x8] sm:$0xf]
    %v231 = vld [vmem:[#allocation7 + $0xc] sm:$0xf]
    %v232 = vld [vmem:[#allocation8] sm:$0x1]
    %v234 = vlaneseq
    %v235 = vshrl.u32 %v234, 7
    %v236 = vsub.s32 0, %v235
    %v237 = vrot.slane %v232, %v236
    %v243 = vunpack.c.l.b16 %v228
    %v244 = vunpack.c.l.b16 %v229
    %v245 = vunpack.c.l.b16 %v230
    %v246 = vunpack.c.l.b16 %v231
    %v247 = vpack.c.b16 %v244, %v243
    %v248 = vpack.c.b16 %v246, %v245
    %vm251 = vcmask 261120
    %v253 = vsel %vm251, %v227, 0
    %255 = vmatprep.subr.bf16.mxu0 0
    %256 = vmatpush1.bf16.msra.mxu0 %v247
    %257 = vmatprep.subr.bf16.mxu0 0
    %258 = vmatpush1.bf16.msra.mxu0 %v248
    %259 = vmatprep.subr.bf16.mxu0 0
    %260 = vmatpush1.bf16.msra.mxu0 0
    %261 = vmatprep.subr.bf16.mxu0 0
    %262 = vmatpush1.bf16.msra.mxu0 0
    %263 = vmatprep.subr.bf16.mxu0 0
    %264 = vmatpush1.bf16.msra.mxu0 0
    %265 = vmatprep.subr.bf16.mxu0 0
    %266 = vmatpush1.bf16.msra.mxu0 0
    %267 = vmatprep.subr.bf16.mxu0 0
    %268 = vmatpush1.bf16.msra.mxu0 0
    %269 = vmatprep.subr.bf16.mxu0 0
    %270 = vmatpush1.bf16.msra.mxu0 0
    %271 = vmatprep.subr.bf16.mxu0 0
    %272 = vmatpush1.bf16.msra.mxu0 0
    %273 = vmatprep.subr.bf16.mxu0 0
    %274 = vmatpush1.bf16.msra.mxu0 0
    %275 = vmatprep.subr.bf16.mxu0 0
    %276 = vmatpush1.bf16.msra.mxu0 0
    %277 = vmatprep.subr.bf16.mxu0 0
    %278 = vmatpush1.bf16.msra.mxu0 0
    %279 = vmatprep.subr.bf16.mxu0 0
    %280 = vmatpush1.bf16.msra.mxu0 0
    %281 = vmatprep.subr.bf16.mxu0 0
    %282 = vmatpush1.bf16.msra.mxu0 0
    %283 = vmatprep.subr.bf16.mxu0 0
    %284 = vmatpush1.bf16.msra.mxu0 0
    %285 = vmatprep.subr.bf16.mxu0 0
    %286 = vmatpush1.bf16.msra.mxu0 0
    %287 = vmatprep.mubr.bf16.mxu0 0
    %288 = vmatmul.mubr.bf16.gmra.mrb[0].mxu0 %v253
    %v289 = vpop.f32.mrb[0].mxu0
    %v290 = vadd.f32 %v237, %v289
    %v291 = vpop.f32.mrb[0].mxu0
    %v292 = vpop.f32.mrb[0].mxu0
    %v293 = vadd.f32 %v237, %v292
    %v294 = vpop.f32.mrb[0].mxu0
    %295 = vdwg.mxu0
    %v296 = vpack.c.bf16 %v290, %v290
    %v297 = vpack.c.bf16 %v293, %v293
    %v300 = vlaneseq
    %v301 = vshrl.u32 %v300, 7
    %v302 = vsub.s32 0, %v301
    %v303 = vrot.slane %v225, %v302
    %v304 = vlaneseq
    %v305 = vshrl.u32 %v304, 7
    %v306 = vsub.s32 0, %v305
    %v307 = vrot.slane %v226, %v306
    %311 = vrot.lane.b32.xlu0 %v296, 96
    %v312 = vpop.permute.xlu0 %311
    %vm313 = vcmask 64512
    %v315 = vsel %vm313, %v296, 0
    %v318 = vsel %vm313, %v312, 0
    %320 = vmatprep.subr.bf16.mxu0 0
    %321 = vmatpush1.bf16.xpose.msra.mxu0 %v318
    %322 = vmatprep.subr.bf16.mxu0 0
    %323 = vmatpush1.bf16.xpose.msra.mxu0 0
    %324 = vmatprep.subr.bf16.mxu0 0
    %325 = vmatpush1.bf16.xpose.msra.mxu0 0
    %326 = vmatprep.subr.bf16.mxu0 0
    %327 = vmatpush1.bf16.xpose.msra.mxu0 0
    %328 = vmatprep.subr.bf16.mxu0 0
    %329 = vmatpush1.bf16.xpose.msra.mxu0 0
    %330 = vmatprep.subr.bf16.mxu0 0
    %331 = vmatpush1.bf16.xpose.msra.mxu0 0
    %332 = vmatprep.subr.bf16.mxu0 0
    %333 = vmatpush1.bf16.xpose.msra.mxu0 0
    %334 = vmatprep.subr.bf16.mxu0 0
    %335 = vmatpush1.bf16.xpose.msra.mxu0 0
    %336 = vmatprep.subr.bf16.mxu0 0
    %337 = vmatpush1.bf16.xpose.msra.mxu0 0
    %338 = vmatprep.subr.bf16.mxu0 0
    %339 = vmatpush1.bf16.xpose.msra.mxu0 0
    %340 = vmatprep.subr.bf16.mxu0 0
    %341 = vmatpush1.bf16.xpose.msra.mxu0 0
    %342 = vmatprep.subr.bf16.mxu0 0
    %343 = vmatpush1.bf16.xpose.msra.mxu0 0
    %344 = vmatprep.subr.bf16.mxu0 0
    %345 = vmatpush1.bf16.xpose.msra.mxu0 0
    %346 = vmatprep.subr.bf16.mxu0 0
    %347 = vmatpush1.bf16.xpose.msra.mxu0 0
    %348 = vmatprep.subr.bf16.mxu0 0
    %349 = vmatpush1.bf16.xpose.msra.mxu0 0
    %350 = vmatprep.subr.bf16.mxu0 0
    %351 = vmatpush1.bf16.xpose.msra.mxu0 0
    %352 = vmatprep.mubr.bf16.mxu0 0
    %353 = vmatmul.mubr.bf16.gmra.mrb[0].mxu0 %v315
    %v354 = vpop.f32.mrb[0].mxu0
    %v355 = vadd.f32 %v303, %v354
    %v356 = vpop.f32.mrb[0].mxu0
    %v357 = vpop.f32.mrb[0].mxu0
    %v358 = vpop.f32.mrb[0].mxu0
    %359 = vdwg.mxu0
    %361 = vrot.lane.b32.xlu0 %v297, 96
    %v362 = vpop.permute.xlu0 %361
    %v364 = vsel %vm313, %v297, 0
    %v367 = vsel %vm313, %v362, 0
    %369 = vmatprep.subr.bf16.mxu0 0
    %370 = vmatpush1.bf16.xpose.msra.mxu0 %v367
    %371 = vmatprep.subr.bf16.mxu0 0
    %372 = vmatpush1.bf16.xpose.msra.mxu0 0
    %373 = vmatprep.subr.bf16.mxu0 0
    %374 = vmatpush1.bf16.xpose.msra.mxu0 0
    %375 = vmatprep.subr.bf16.mxu0 0
    %376 = vmatpush1.bf16.xpose.msra.mxu0 0
    %377 = vmatprep.subr.bf16.mxu0 0
    %378 = vmatpush1.bf16.xpose.msra.mxu0 0
    %379 = vmatprep.subr.bf16.mxu0 0
    %380 = vmatpush1.bf16.xpose.msra.mxu0 0
    %381 = vmatprep.subr.bf16.mxu0 0
    %382 = vmatpush1.bf16.xpose.msra.mxu0 0
    %383 = vmatprep.subr.bf16.mxu0 0
    %384 = vmatpush1.bf16.xpose.msra.mxu0 0
    %385 = vmatprep.subr.bf16.mxu0 0
    %386 = vmatpush1.bf16.xpose.msra.mxu0 0
    %387 = vmatprep.subr.bf16.mxu0 0
    %388 = vmatpush1.bf16.xpose.msra.mxu0 0
    %389 = vmatprep.subr.bf16.mxu0 0
    %390 = vmatpush1.bf16.xpose.msra.mxu0 0
    %391 = vmatprep.subr.bf16.mxu0 0
    %392 = vmatpush1.bf16.xpose.msra.mxu0 0
    %393 = vmatprep.subr.bf16.mxu0 0
    %394 = vmatpush1.bf16.xpose.msra.mxu0 0
    %395 = vmatprep.subr.bf16.mxu0 0
    %396 = vmatpush1.bf16.xpose.msra.mxu0 0
    %397 = vmatprep.subr.bf16.mxu0 0
    %398 = vmatpush1.bf16.xpose.msra.mxu0 0
    %399 = vmatprep.subr.bf16.mxu0 0
    %400 = vmatpush1.bf16.xpose.msra.mxu0 0
    %401 = vmatprep.mubr.bf16.mxu0 0
    %402 = vmatmul.mubr.bf16.gmra.mrb[0].mxu0 %v364
    %v403 = vpop.f32.mrb[0].mxu0
    %v404 = vadd.f32 %v307, %v403
    %v405 = vpop.f32.mrb[0].mxu0
    %v406 = vpop.f32.mrb[0].mxu0
    %v407 = vpop.f32.mrb[0].mxu0
    %408 = vdwg.mxu0
    %v409 = vsel %vm313, %v355, -inf
    %410 = vmax.xlane.f32.xlu0 %v409
    %v411 = vpop.xlane.xlu0 %410
    %v412 = vsel %vm313, %v404, -inf
    %413 = vmax.xlane.f32.xlu0 %v412
    %v414 = vpop.xlane.xlu0 %413
    %v415 = vsub.f32 %v355, %v411
    %v416 = vsub.f32 %v404, %v414
    %v417 = vmul.f32 %v415, 1.442695
    %v418 = vpow.pop %v417
    %v419 = vmul.f32 %v416, 1.442695
    %v420 = vpow.pop %v419
    %v421 = vsel %vm313, %v418, 0.0
    %422 = vadd.xlane.f32.xlu0 %v421
    %v423 = vpop.xlane.xlu0 %422
    %v424 = vsel %vm313, %v420, 0.0
    %425 = vadd.xlane.f32.xlu0 %v424
    %v426 = vpop.xlane.xlu0 %425
    %v427 = vrcp.pop %v423
    %v428 = vrcp.pop %v426
    %v429 = vmul.f32 %v418, %v427
    %v430 = vmul.f32 %v420, %v428
    %v431 = vpack.c.bf16 %v429, %v429
    %v432 = vpack.c.bf16 %v430, %v430
    %433 = vrot.lane.b32.xlu0 %v296, 64
    %v434 = vpop.permute.xlu0 %433
    %v436 = vsel %vm313, %v431, 0
    %vm438 = vcmask 1043456
    %v440 = vsel %vm438, %v434, 0
    %442 = vmatprep.subr.bf16.mxu0 0
    %443 = vmatpush1.bf16.msra.mxu0 %v440
    %444 = vmatprep.subr.bf16.mxu0 0
    %445 = vmatpush1.bf16.msra.mxu0 0
    %446 = vmatprep.subr.bf16.mxu0 0
    %447 = vmatpush1.bf16.msra.mxu0 0
    %448 = vmatprep.subr.bf16.mxu0 0
    %449 = vmatpush1.bf16.msra.mxu0 0
    %450 = vmatprep.subr.bf16.mxu0 0
    %451 = vmatpush1.bf16.msra.mxu0 0
    %452 = vmatprep.subr.bf16.mxu0 0
    %453 = vmatpush1.bf16.msra.mxu0 0
    %454 = vmatprep.subr.bf16.mxu0 0
    %455 = vmatpush1.bf16.msra.mxu0 0
    %456 = vmatprep.subr.bf16.mxu0 0
    %457 = vmatpush1.bf16.msra.mxu0 0
    %458 = vmatprep.subr.bf16.mxu0 0
    %459 = vmatpush1.bf16.msra.mxu0 0
    %460 = vmatprep.subr.bf16.mxu0 0
    %461 = vmatpush1.bf16.msra.mxu0 0
    %462 = vmatprep.subr.bf16.mxu0 0
    %463 = vmatpush1.bf16.msra.mxu0 0
    %464 = vmatprep.subr.bf16.mxu0 0
    %465 = vmatpush1.bf16.msra.mxu0 0
    %466 = vmatprep.subr.bf16.mxu0 0
    %467 = vmatpush1.bf16.msra.mxu0 0
    %468 = vmatprep.subr.bf16.mxu0 0
    %469 = vmatpush1.bf16.msra.mxu0 0
    %470 = vmatprep.subr.bf16.mxu0 0
    %471 = vmatpush1.bf16.msra.mxu0 0
    %472 = vmatprep.subr.bf16.mxu0 0
    %473 = vmatpush1.bf16.msra.mxu0 0
    %474 = vmatprep.mubr.bf16.mxu0 0
    %475 = vmatmul.mubr.bf16.gmra.mrb[0].mxu0 %v436
    %v476 = vpop.f32.mrb[0].mxu0
    %v477 = vadd.f32 0.0, %v476
    %v478 = vpop.f32.mrb[0].mxu0
    %v479 = vpop.f32.mrb[0].mxu0
    %v480 = vpop.f32.mrb[0].mxu0
    %481 = vdwg.mxu0
    %482 = vrot.lane.b32.xlu0 %v297, 64
    %v483 = vpop.permute.xlu0 %482
    %v485 = vsel %vm313, %v432, 0
    %v488 = vsel %vm438, %v483, 0
    %490 = vmatprep.subr.bf16.mxu0 0
    %491 = vmatpush1.bf16.msra.mxu0 %v488
    %492 = vmatprep.subr.bf16.mxu0 0
    %493 = vmatpush1.bf16.msra.mxu0 0
    %494 = vmatprep.subr.bf16.mxu0 0
    %495 = vmatpush1.bf16.msra.mxu0 0
    %496 = vmatprep.subr.bf16.mxu0 0
    %497 = vmatpush1.bf16.msra.mxu0 0
    %498 = vmatprep.subr.bf16.mxu0 0
    %499 = vmatpush1.bf16.msra.mxu0 0
    %500 = vmatprep.subr.bf16.mxu0 0
    %501 = vmatpush1.bf16.msra.mxu0 0
    %502 = vmatprep.subr.bf16.mxu0 0
    %503 = vmatpush1.bf16.msra.mxu0 0
    %504 = vmatprep.subr.bf16.mxu0 0
    %505 = vmatpush1.bf16.msra.mxu0 0
    %506 = vmatprep.subr.bf16.mxu0 0
    %507 = vmatpush1.bf16.msra.mxu0 0
    %508 = vmatprep.subr.bf16.mxu0 0
    %509 = vmatpush1.bf16.msra.mxu0 0
    %510 = vmatprep.subr.bf16.mxu0 0
    %511 = vmatpush1.bf16.msra.mxu0 0
    %512 = vmatprep.subr.bf16.mxu0 0
    %513 = vmatpush1.bf16.msra.mxu0 0
    %514 = vmatprep.subr.bf16.mxu0 0
    %515 = vmatpush1.bf16.msra.mxu0 0
    %516 = vmatprep.subr.bf16.mxu0 0
    %517 = vmatpush1.bf16.msra.mxu0 0
    %518 = vmatprep.subr.bf16.mxu0 0
    %519 = vmatpush1.bf16.msra.mxu0 0
    %520 = vmatprep.subr.bf16.mxu0 0
    %521 = vmatpush1.bf16.msra.mxu0 0
    %522 = vmatprep.mubr.bf16.mxu0 0
    %523 = vmatmul.mubr.bf16.gmra.mrb[0].mxu0 %v485
    %v524 = vpop.f32.mrb[0].mxu0
    %v525 = vadd.f32 0.0, %v524
    %v526 = vpop.f32.mrb[0].mxu0
    %v527 = vpop.f32.mrb[0].mxu0
    %v528 = vpop.f32.mrb[0].mxu0
    %529 = vdwg.mxu0
    %530 = vrot.lane.b32.xlu0 %v296, 120
    %v531 = vpop.permute.xlu0 %530
    %532 = vrot.lane.b32.xlu0 %v296, 88
    %v533 = vpop.permute.xlu0 %532
    %v535 = vsel %vm313, %v531, 0
    %v538 = vsel %vm313, %v533, 0
    %540 = vmatprep.subr.bf16.mxu0 0
    %541 = vmatpush1.bf16.xpose.msra.mxu0 %v538
    %542 = vmatprep.subr.bf16.mxu0 0
    %543 = vmatpush1.bf16.xpose.msra.mxu0 0
    %544 = vmatprep.subr.bf16.mxu0 0
    %545 = vmatpush1.bf16.xpose.msra.mxu0 0
    %546 = vmatprep.subr.bf16.mxu0 0
    %547 = vmatpush1.bf16.xpose.msra.mxu0 0
    %548 = vmatprep.subr.bf16.mxu0 0
    %549 = vmatpush1.bf16.xpose.msra.mxu0 0
    %550 = vmatprep.subr.bf16.mxu0 0
    %551 = vmatpush1.bf16.xpose.msra.mxu0 0
    %552 = vmatprep.subr.bf16.mxu0 0
    %553 = vmatpush1.bf16.xpose.msra.mxu0 0
    %554 = vmatprep.subr.bf16.mxu0 0
    %555 = vmatpush1.bf16.xpose.msra.mxu0 0
    %556 = vmatprep.subr.bf16.mxu0 0
    %557 = vmatpush1.bf16.xpose.msra.mxu0 0
    %558 = vmatprep.subr.bf16.mxu0 0
    %559 = vmatpush1.bf16.xpose.msra.mxu0 0
    %560 = vmatprep.subr.bf16.mxu0 0
    %561 = vmatpush1.bf16.xpose.msra.mxu0 0
    %562 = vmatprep.subr.bf16.mxu0 0
    %563 = vmatpush1.bf16.xpose.msra.mxu0 0
    %564 = vmatprep.subr.bf16.mxu0 0
    %565 = vmatpush1.bf16.xpose.msra.mxu0 0
    %566 = vmatprep.subr.bf16.mxu0 0
    %567 = vmatpush1.bf16.xpose.msra.mxu0 0
    %568 = vmatprep.subr.bf16.mxu0 0
    %569 = vmatpush1.bf16.xpose.msra.mxu0 0
    %570 = vmatprep.subr.bf16.mxu0 0
    %571 = vmatpush1.bf16.xpose.msra.mxu0 0
    %572 = vmatprep.mubr.bf16.mxu0 0
    %573 = vmatmul.mubr.bf16.gmra.mrb[0].mxu0 %v535
    %v574 = vpop.f32.mrb[0].mxu0
    %v575 = vadd.f32 %v303, %v574
    %v576 = vpop.f32.mrb[0].mxu0
    %v577 = vpop.f32.mrb[0].mxu0
    %v578 = vpop.f32.mrb[0].mxu0
    %579 = vdwg.mxu0
    %580 = vrot.lane.b32.xlu0 %v297, 120
    %v581 = vpop.permute.xlu0 %580
    %582 = vrot.lane.b32.xlu0 %v297, 88
    %v583 = vpop.permute.xlu0 %582
    %v585 = vsel %vm313, %v581, 0
    %v588 = vsel %vm313, %v583, 0
    %590 = vmatprep.subr.bf16.mxu0 0
    %591 = vmatpush1.bf16.xpose.msra.mxu0 %v588
    %592 = vmatprep.subr.bf16.mxu0 0
    %593 = vmatpush1.bf16.xpose.msra.mxu0 0
    %594 = vmatprep.subr.bf16.mxu0 0
    %595 = vmatpush1.bf16.xpose.msra.mxu0 0
    %596 = vmatprep.subr.bf16.mxu0 0
    %597 = vmatpush1.bf16.xpose.msra.mxu0 0
    %598 = vmatprep.subr.bf16.mxu0 0
    %599 = vmatpush1.bf16.xpose.msra.mxu0 0
    %600 = vmatprep.subr.bf16.mxu0 0
    %601 = vmatpush1.bf16.xpose.msra.mxu0 0
    %602 = vmatprep.subr.bf16.mxu0 0
    %603 = vmatpush1.bf16.xpose.msra.mxu0 0
    %604 = vmatprep.subr.bf16.mxu0 0
    %605 = vmatpush1.bf16.xpose.msra.mxu0 0
    %606 = vmatprep.subr.bf16.mxu0 0
    %607 = vmatpush1.bf16.xpose.msra.mxu0 0
    %608 = vmatprep.subr.bf16.mxu0 0
    %609 = vmatpush1.bf16.xpose.msra.mxu0 0
    %610 = vmatprep.subr.bf16.mxu0 0
    %611 = vmatpush1.bf16.xpose.msra.mxu0 0
    %612 = vmatprep.subr.bf16.mxu0 0
    %613 = vmatpush1.bf16.xpose.msra.mxu0 0
    %614 = vmatprep.subr.bf16.mxu0 0
    %615 = vmatpush1.bf16.xpose.msra.mxu0 0
    %616 = vmatprep.subr.bf16.mxu0 0
    %617 = vmatpush1.bf16.xpose.msra.mxu0 0
    %618 = vmatprep.subr.bf16.mxu0 0
    %619 = vmatpush1.bf16.xpose.msra.mxu0 0
    %620 = vmatprep.subr.bf16.mxu0 0
    %621 = vmatpush1.bf16.xpose.msra.mxu0 0
    %622 = vmatprep.mubr.bf16.mxu0 0
    %623 = vmatmul.mubr.bf16.gmra.mrb[0].mxu0 %v585
    %v624 = vpop.f32.mrb[0].mxu0
    %v625 = vadd.f32 %v307, %v624
    %v626 = vpop.f32.mrb[0].mxu0
    %v627 = vpop.f32.mrb[0].mxu0
    %v628 = vpop.f32.mrb[0].mxu0
    %629 = vdwg.mxu0
    %v630 = vsel %vm313, %v575, -inf
    %631 = vmax.xlane.f32.xlu0 %v630
    %v632 = vpop.xlane.xlu0 %631
    %v633 = vsel %vm313, %v625, -inf
    %634 = vmax.xlane.f32.xlu0 %v633
    %v635 = vpop.xlane.xlu0 %634
    %v636 = vsub.f32 %v575, %v632
    %v637 = vsub.f32 %v625, %v635
    %v638 = vmul.f32 %v636, 1.442695
    %v639 = vpow.pop %v638
    %v640 = vmul.f32 %v637, 1.442695
    %v641 = vpow.pop %v640
    %v642 = vsel %vm313, %v639, 0.0
    %643 = vadd.xlane.f32.xlu0 %v642
    %v644 = vpop.xlane.xlu0 %643
    %v645 = vsel %vm313, %v641, 0.0
    %646 = vadd.xlane.f32.xlu0 %v645
    %v647 = vpop.xlane.xlu0 %646
    %v648 = vrcp.pop %v644
    %v649 = vrcp.pop %v647
    %v650 = vmul.f32 %v639, %v648
    %v651 = vmul.f32 %v641, %v649
    %v652 = vpack.c.bf16 %v650, %v650
    %v653 = vpack.c.bf16 %v651, %v651
    %654 = vrot.lane.b32.xlu0 %v296, 56
    %v655 = vpop.permute.xlu0 %654
    %v657 = vsel %vm313, %v652, 0
    %v660 = vsel %vm438, %v655, 0
    %662 = vmatprep.subr.bf16.mxu0 0
    %663 = vmatpush1.bf16.msra.mxu0 %v660
    %664 = vmatprep.subr.bf16.mxu0 0
    %665 = vmatpush1.bf16.msra.mxu0 0
    %666 = vmatprep.subr.bf16.mxu0 0
    %667 = vmatpush1.bf16.msra.mxu0 0
    %668 = vmatprep.subr.bf16.mxu0 0
    %669 = vmatpush1.bf16.msra.mxu0 0
    %670 = vmatprep.subr.bf16.mxu0 0
    %671 = vmatpush1.bf16.msra.mxu0 0
    %672 = vmatprep.subr.bf16.mxu0 0
    %673 = vmatpush1.bf16.msra.mxu0 0
    %674 = vmatprep.subr.bf16.mxu0 0
    %675 = vmatpush1.bf16.msra.mxu0 0
    %676 = vmatprep.subr.bf16.mxu0 0
    %677 = vmatpush1.bf16.msra.mxu0 0
    %678 = vmatprep.subr.bf16.mxu0 0
    %679 = vmatpush1.bf16.msra.mxu0 0
    %680 = vmatprep.subr.bf16.mxu0 0
    %681 = vmatpush1.bf16.msra.mxu0 0
    %682 = vmatprep.subr.bf16.mxu0 0
    %683 = vmatpush1.bf16.msra.mxu0 0
    %684 = vmatprep.subr.bf16.mxu0 0
    %685 = vmatpush1.bf16.msra.mxu0 0
    %686 = vmatprep.subr.bf16.mxu0 0
    %687 = vmatpush1.bf16.msra.mxu0 0
    %688 = vmatprep.subr.bf16.mxu0 0
    %689 = vmatpush1.bf16.msra.mxu0 0
    %690 = vmatprep.subr.bf16.mxu0 0
    %691 = vmatpush1.bf16.msra.mxu0 0
    %692 = vmatprep.subr.bf16.mxu0 0
    %693 = vmatpush1.bf16.msra.mxu0 0
    %694 = vmatprep.mubr.bf16.mxu0 0
    %695 = vmatmul.mubr.bf16.gmra.mrb[0].mxu0 %v657
    %v696 = vpop.f32.mrb[0].mxu0
    %v697 = vadd.f32 0.0, %v696
    %v698 = vpop.f32.mrb[0].mxu0
    %v699 = vpop.f32.mrb[0].mxu0
    %v700 = vpop.f32.mrb[0].mxu0
    %701 = vdwg.mxu0
    %702 = vrot.lane.b32.xlu0 %v297, 56
    %v703 = vpop.permute.xlu0 %702
    %v705 = vsel %vm313, %v653, 0
    %v708 = vsel %vm438, %v703, 0
    %710 = vmatprep.subr.bf16.mxu0 0
    %711 = vmatpush1.bf16.msra.mxu0 %v708
    %712 = vmatprep.subr.bf16.mxu0 0
    %713 = vmatpush1.bf16.msra.mxu0 0
    %714 = vmatprep.subr.bf16.mxu0 0
    %715 = vmatpush1.bf16.msra.mxu0 0
    %716 = vmatprep.subr.bf16.mxu0 0
    %717 = vmatpush1.bf16.msra.mxu0 0
    %718 = vmatprep.subr.bf16.mxu0 0
    %719 = vmatpush1.bf16.msra.mxu0 0
    %720 = vmatprep.subr.bf16.mxu0 0
    %721 = vmatpush1.bf16.msra.mxu0 0
    %722 = vmatprep.subr.bf16.mxu0 0
    %723 = vmatpush1.bf16.msra.mxu0 0
    %724 = vmatprep.subr.bf16.mxu0 0
    %725 = vmatpush1.bf16.msra.mxu0 0
    %726 = vmatprep.subr.bf16.mxu0 0
    %727 = vmatpush1.bf16.msra.mxu0 0
    %728 = vmatprep.subr.bf16.mxu0 0
    %729 = vmatpush1.bf16.msra.mxu0 0
    %730 = vmatprep.subr.bf16.mxu0 0
    %731 = vmatpush1.bf16.msra.mxu0 0
    %732 = vmatprep.subr.bf16.mxu0 0
    %733 = vmatpush1.bf16.msra.mxu0 0
    %734 = vmatprep.subr.bf16.mxu0 0
    %735 = vmatpush1.bf16.msra.mxu0 0
    %736 = vmatprep.subr.bf16.mxu0 0
    %737 = vmatpush1.bf16.msra.mxu0 0
    %738 = vmatprep.subr.bf16.mxu0 0
    %739 = vmatpush1.bf16.msra.mxu0 0
    %740 = vmatprep.subr.bf16.mxu0 0
    %741 = vmatpush1.bf16.msra.mxu0 0
    %742 = vmatprep.mubr.bf16.mxu0 0
    %743 = vmatmul.mubr.bf16.gmra.mrb[0].mxu0 %v705
    %v744 = vpop.f32.mrb[0].mxu0
    %v745 = vadd.f32 0.0, %v744
    %v746 = vpop.f32.mrb[0].mxu0
    %v747 = vpop.f32.mrb[0].mxu0
    %v748 = vpop.f32.mrb[0].mxu0
    %749 = vdwg.mxu0
    %750 = vrot.lane.b32.xlu0 %v296, 112
    %v751 = vpop.permute.xlu0 %750
    %752 = vrot.lane.b32.xlu0 %v296, 80
    %v753 = vpop.permute.xlu0 %752
    %v755 = vsel %vm313, %v751, 0
    %v758 = vsel %vm313, %v753, 0
    %760 = vmatprep.subr.bf16.mxu0 0
    %761 = vmatpush1.bf16.xpose.msra.mxu0 %v758
    %762 = vmatprep.subr.bf16.mxu0 0
    %763 = vmatpush1.bf16.xpose.msra.mxu0 0
    %764 = vmatprep.subr.bf16.mxu0 0
    %765 = vmatpush1.bf16.xpose.msra.mxu0 0
    %766 = vmatprep.subr.bf16.mxu0 0
    %767 = vmatpush1.bf16.xpose.msra.mxu0 0
    %768 = vmatprep.subr.bf16.mxu0 0
    %769 = vmatpush1.bf16.xpose.msra.mxu0 0
    %770 = vmatprep.subr.bf16.mxu0 0
    %771 = vmatpush1.bf16.xpose.msra.mxu0 0
    %772 = vmatprep.subr.bf16.mxu0 0
    %773 = vmatpush1.bf16.xpose.msra.mxu0 0
    %774 = vmatprep.subr.bf16.mxu0 0
    %775 = vmatpush1.bf16.xpose.msra.mxu0 0
    %776 = vmatprep.subr.bf16.mxu0 0
    %777 = vmatpush1.bf16.xpose.msra.mxu0 0
    %778 = vmatprep.subr.bf16.mxu0 0
    %779 = vmatpush1.bf16.xpose.msra.mxu0 0
    %780 = vmatprep.subr.bf16.mxu0 0
    %781 = vmatpush1.bf16.xpose.msra.mxu0 0
    %782 = vmatprep.subr.bf16.mxu0 0
    %783 = vmatpush1.bf16.xpose.msra.mxu0 0
    %784 = vmatprep.subr.bf16.mxu0 0
    %785 = vmatpush1.bf16.xpose.msra.mxu0 0
    %786 = vmatprep.subr.bf16.mxu0 0
    %787 = vmatpush1.bf16.xpose.msra.mxu0 0
    %788 = vmatprep.subr.bf16.mxu0 0
    %789 = vmatpush1.bf16.xpose.msra.mxu0 0
    %790 = vmatprep.subr.bf16.mxu0 0
    %791 = vmatpush1.bf16.xpose.msra.mxu0 0
    %792 = vmatprep.mubr.bf16.mxu0 0
    %793 = vmatmul.mubr.bf16.gmra.mrb[0].mxu0 %v755
    %v794 = vpop.f32.mrb[0].mxu0
    %v795 = vadd.f32 %v303, %v794
    %v796 = vpop.f32.mrb[0].mxu0
    %v797 = vpop.f32.mrb[0].mxu0
    %v798 = vpop.f32.mrb[0].mxu0
    %799 = vdwg.mxu0
    %800 = vrot.lane.b32.xlu0 %v297, 112
    %v801 = vpop.permute.xlu0 %800
    %802 = vrot.lane.b32.xlu0 %v297, 80
    %v803 = vpop.permute.xlu0 %802
    %v805 = vsel %vm313, %v801, 0
    %v808 = vsel %vm313, %v803, 0
    %810 = vmatprep.subr.bf16.mxu0 0
    %811 = vmatpush1.bf16.xpose.msra.mxu0 %v808
    %812 = vmatprep.subr.bf16.mxu0 0
    %813 = vmatpush1.bf16.xpose.msra.mxu0 0
    %814 = vmatprep.subr.bf16.mxu0 0
    %815 = vmatpush1.bf16.xpose.msra.mxu0 0
    %816 = vmatprep.subr.bf16.mxu0 0
    %817 = vmatpush1.bf16.xpose.msra.mxu0 0
    %818 = vmatprep.subr.bf16.mxu0 0
    %819 = vmatpush1.bf16.xpose.msra.mxu0 0
    %820 = vmatprep.subr.bf16.mxu0 0
    %821 = vmatpush1.bf16.xpose.msra.mxu0 0
    %822 = vmatprep.subr.bf16.mxu0 0
    %823 = vmatpush1.bf16.xpose.msra.mxu0 0
    %824 = vmatprep.subr.bf16.mxu0 0
    %825 = vmatpush1.bf16.xpose.msra.mxu0 0
    %826 = vmatprep.subr.bf16.mxu0 0
    %827 = vmatpush1.bf16.xpose.msra.mxu0 0
    %828 = vmatprep.subr.bf16.mxu0 0
    %829 = vmatpush1.bf16.xpose.msra.mxu0 0
    %830 = vmatprep.subr.bf16.mxu0 0
    %831 = vmatpush1.bf16.xpose.msra.mxu0 0
    %832 = vmatprep.subr.bf16.mxu0 0
    %833 = vmatpush1.bf16.xpose.msra.mxu0 0
    %834 = vmatprep.subr.bf16.mxu0 0
    %835 = vmatpush1.bf16.xpose.msra.mxu0 0
    %836 = vmatprep.subr.bf16.mxu0 0
    %837 = vmatpush1.bf16.xpose.msra.mxu0 0
    %838 = vmatprep.subr.bf16.mxu0 0
    %839 = vmatpush1.bf16.xpose.msra.mxu0 0
    %840 = vmatprep.subr.bf16.mxu0 0
    %841 = vmatpush1.bf16.xpose.msra.mxu0 0
    %842 = vmatprep.mubr.bf16.mxu0 0
    %843 = vmatmul.mubr.bf16.gmra.mrb[0].mxu0 %v805
    %v844 = vpop.f32.mrb[0].mxu0
    %v845 = vadd.f32 %v307, %v844
    %v846 = vpop.f32.mrb[0].mxu0
    %v847 = vpop.f32.mrb[0].mxu0
    %v848 = vpop.f32.mrb[0].mxu0
    %849 = vdwg.mxu0
    %v850 = vsel %vm313, %v795, -inf
    %851 = vmax.xlane.f32.xlu0 %v850
    %v852 = vpop.xlane.xlu0 %851
    %v853 = vsel %vm313, %v845, -inf
    %854 = vmax.xlane.f32.xlu0 %v853
    %v855 = vpop.xlane.xlu0 %854
    %v856 = vsub.f32 %v795, %v852
    %v857 = vsub.f32 %v845, %v855
    %v858 = vmul.f32 %v856, 1.442695
    %v859 = vpow.pop %v858
    %v860 = vmul.f32 %v857, 1.442695
    %v861 = vpow.pop %v860
    %v862 = vsel %vm313, %v859, 0.0
    %863 = vadd.xlane.f32.xlu0 %v862
    %v864 = vpop.xlane.xlu0 %863
    %v865 = vsel %vm313, %v861, 0.0
    %866 = vadd.xlane.f32.xlu0 %v865
    %v867 = vpop.xlane.xlu0 %866
    %v868 = vrcp.pop %v864
    %v869 = vrcp.pop %v867
    %v870 = vmul.f32 %v859, %v868
    %v871 = vmul.f32 %v861, %v869
    %v872 = vpack.c.bf16 %v870, %v870
    %v873 = vpack.c.bf16 %v871, %v871
    %874 = vrot.lane.b32.xlu0 %v296, 48
    %v875 = vpop.permute.xlu0 %874
    %v877 = vsel %vm313, %v872, 0
    %v880 = vsel %vm438, %v875, 0
    %882 = vmatprep.subr.bf16.mxu0 0
    %883 = vmatpush1.bf16.msra.mxu0 %v880
    %884 = vmatprep.subr.bf16.mxu0 0
    %885 = vmatpush1.bf16.msra.mxu0 0
    %886 = vmatprep.subr.bf16.mxu0 0
    %887 = vmatpush1.bf16.msra.mxu0 0
    %888 = vmatprep.subr.bf16.mxu0 0
    %889 = vmatpush1.bf16.msra.mxu0 0
    %890 = vmatprep.subr.bf16.mxu0 0
    %891 = vmatpush1.bf16.msra.mxu0 0
    %892 = vmatprep.subr.bf16.mxu0 0
    %893 = vmatpush1.bf16.msra.mxu0 0
    %894 = vmatprep.subr.bf16.mxu0 0
    %895 = vmatpush1.bf16.msra.mxu0 0
    %896 = vmatprep.subr.bf16.mxu0 0
    %897 = vmatpush1.bf16.msra.mxu0 0
    %898 = vmatprep.subr.bf16.mxu0 0
    %899 = vmatpush1.bf16.msra.mxu0 0
    %900 = vmatprep.subr.bf16.mxu0 0
    %901 = vmatpush1.bf16.msra.mxu0 0
    %902 = vmatprep.subr.bf16.mxu0 0
    %903 = vmatpush1.bf16.msra.mxu0 0
    %904 = vmatprep.subr.bf16.mxu0 0
    %905 = vmatpush1.bf16.msra.mxu0 0
    %906 = vmatprep.subr.bf16.mxu0 0
    %907 = vmatpush1.bf16.msra.mxu0 0
    %908 = vmatprep.subr.bf16.mxu0 0
    %909 = vmatpush1.bf16.msra.mxu0 0
    %910 = vmatprep.subr.bf16.mxu0 0
    %911 = vmatpush1.bf16.msra.mxu0 0
    %912 = vmatprep.subr.bf16.mxu0 0
    %913 = vmatpush1.bf16.msra.mxu0 0
    %914 = vmatprep.mubr.bf16.mxu0 0
    %915 = vmatmul.mubr.bf16.gmra.mrb[0].mxu0 %v877
    %v916 = vpop.f32.mrb[0].mxu0
    %v917 = vadd.f32 0.0, %v916
    %v918 = vpop.f32.mrb[0].mxu0
    %v919 = vpop.f32.mrb[0].mxu0
    %v920 = vpop.f32.mrb[0].mxu0
    %921 = vdwg.mxu0
    %922 = vrot.lane.b32.xlu0 %v297, 48
    %v923 = vpop.permute.xlu0 %922
    %v925 = vsel %vm313, %v873, 0
    %v928 = vsel %vm438, %v923, 0
    %930 = vmatprep.subr.bf16.mxu0 0
    %931 = vmatpush1.bf16.msra.mxu0 %v928
    %932 = vmatprep.subr.bf16.mxu0 0
    %933 = vmatpush1.bf16.msra.mxu0 0
    %934 = vmatprep.subr.bf16.mxu0 0
    %935 = vmatpush1.bf16.msra.mxu0 0
    %936 = vmatprep.subr.bf16.mxu0 0
    %937 = vmatpush1.bf16.msra.mxu0 0
    %938 = vmatprep.subr.bf16.mxu0 0
    %939 = vmatpush1.bf16.msra.mxu0 0
    %940 = vmatprep.subr.bf16.mxu0 0
    %941 = vmatpush1.bf16.msra.mxu0 0
    %942 = vmatprep.subr.bf16.mxu0 0
    %943 = vmatpush1.bf16.msra.mxu0 0
    %944 = vmatprep.subr.bf16.mxu0 0
    %945 = vmatpush1.bf16.msra.mxu0 0
    %946 = vmatprep.subr.bf16.mxu0 0
    %947 = vmatpush1.bf16.msra.mxu0 0
    %948 = vmatprep.subr.bf16.mxu0 0
    %949 = vmatpush1.bf16.msra.mxu0 0
    %950 = vmatprep.subr.bf16.mxu0 0
    %951 = vmatpush1.bf16.msra.mxu0 0
    %952 = vmatprep.subr.bf16.mxu0 0
    %953 = vmatpush1.bf16.msra.mxu0 0
    %954 = vmatprep.subr.bf16.mxu0 0
    %955 = vmatpush1.bf16.msra.mxu0 0
    %956 = vmatprep.subr.bf16.mxu0 0
    %957 = vmatpush1.bf16.msra.mxu0 0
    %958 = vmatprep.subr.bf16.mxu0 0
    %959 = vmatpush1.bf16.msra.mxu0 0
    %960 = vmatprep.subr.bf16.mxu0 0
    %961 = vmatpush1.bf16.msra.mxu0 0
    %962 = vmatprep.mubr.bf16.mxu0 0
    %963 = vmatmul.mubr.bf16.gmra.mrb[0].mxu0 %v925
    %v964 = vpop.f32.mrb[0].mxu0
    %v965 = vadd.f32 0.0, %v964
    %v966 = vpop.f32.mrb[0].mxu0
    %v967 = vpop.f32.mrb[0].mxu0
    %v968 = vpop.f32.mrb[0].mxu0
    %969 = vdwg.mxu0
    %970 = vrot.lane.b32.xlu0 %v296, 104
    %v971 = vpop.permute.xlu0 %970
    %972 = vrot.lane.b32.xlu0 %v296, 72
    %v973 = vpop.permute.xlu0 %972
    %v975 = vsel %vm313, %v971, 0
    %v978 = vsel %vm313, %v973, 0
    %980 = vmatprep.subr.bf16.mxu0 0
    %981 = vmatpush1.bf16.xpose.msra.mxu0 %v978
    %982 = vmatprep.subr.bf16.mxu0 0
    %983 = vmatpush1.bf16.xpose.msra.mxu0 0
    %984 = vmatprep.subr.bf16.mxu0 0
    %985 = vmatpush1.bf16.xpose.msra.mxu0 0
    %986 = vmatprep.subr.bf16.mxu0 0
    %987 = vmatpush1.bf16.xpose.msra.mxu0 0
    %988 = vmatprep.subr.bf16.mxu0 0
    %989 = vmatpush1.bf16.xpose.msra.mxu0 0
    %990 = vmatprep.subr.bf16.mxu0 0
    %991 = vmatpush1.bf16.xpose.msra.mxu0 0
    %992 = vmatprep.subr.bf16.mxu0 0
    %993 = vmatpush1.bf16.xpose.msra.mxu0 0
    %994 = vmatprep.subr.bf16.mxu0 0
    %995 = vmatpush1.bf16.xpose.msra.mxu0 0
    %996 = vmatprep.subr.bf16.mxu0 0
    %997 = vmatpush1.bf16.xpose.msra.mxu0 0
    %998 = vmatprep.subr.bf16.mxu0 0
    %999 = vmatpush1.bf16.xpose.msra.mxu0 0
    %1000 = vmatprep.subr.bf16.mxu0 0
    %1001 = vmatpush1.bf16.xpose.msra.mxu0 0
    %1002 = vmatprep.subr.bf16.mxu0 0
    %1003 = vmatpush1.bf16.xpose.msra.mxu0 0
    %1004 = vmatprep.subr.bf16.mxu0 0
    %1005 = vmatpush1.bf16.xpose.msra.mxu0 0
    %1006 = vmatprep.subr.bf16.mxu0 0
    %1007 = vmatpush1.bf16.xpose.msra.mxu0 0
    %1008 = vmatprep.subr.bf16.mxu0 0
    %1009 = vmatpush1.bf16.xpose.msra.mxu0 0
    %1010 = vmatprep.subr.bf16.mxu0 0
    %1011 = vmatpush1.bf16.xpose.msra.mxu0 0
    %1012 = vmatprep.mubr.bf16.mxu0 0
    %1013 = vmatmul.mubr.bf16.gmra.mrb[0].mxu0 %v975
    %v1014 = vpop.f32.mrb[0].mxu0
    %v1015 = vadd.f32 %v303, %v1014
    %v1016 = vpop.f32.mrb[0].mxu0
    %v1017 = vpop.f32.mrb[0].mxu0
    %v1018 = vpop.f32.mrb[0].mxu0
    %1019 = vdwg.mxu0
    %1020 = vrot.lane.b32.xlu0 %v297, 104
    %v1021 = vpop.permute.xlu0 %1020
    %1022 = vrot.lane.b32.xlu0 %v297, 72
    %v1023 = vpop.permute.xlu0 %1022
    %v1025 = vsel %vm313, %v1021, 0
    %v1028 = vsel %vm313, %v1023, 0
    %1030 = vmatprep.subr.bf16.mxu0 0
    %1031 = vmatpush1.bf16.xpose.msra.mxu0 %v1028
    %1032 = vmatprep.subr.bf16.mxu0 0
    %1033 = vmatpush1.bf16.xpose.msra.mxu0 0
    %1034 = vmatprep.subr.bf16.mxu0 0
    %1035 = vmatpush1.bf16.xpose.msra.mxu0 0
    %1036 = vmatprep.subr.bf16.mxu0 0
    %1037 = vmatpush1.bf16.xpose.msra.mxu0 0
    %1038 = vmatprep.subr.bf16.mxu0 0
    %1039 = vmatpush1.bf16.xpose.msra.mxu0 0
    %1040 = vmatprep.subr.bf16.mxu0 0
    %1041 = vmatpush1.bf16.xpose.msra.mxu0 0
    %1042 = vmatprep.subr.bf16.mxu0 0
    %1043 = vmatpush1.bf16.xpose.msra.mxu0 0
    %1044 = vmatprep.subr.bf16.mxu0 0
    %1045 = vmatpush1.bf16.xpose.msra.mxu0 0
    %1046 = vmatprep.subr.bf16.mxu0 0
    %1047 = vmatpush1.bf16.xpose.msra.mxu0 0
    %1048 = vmatprep.subr.bf16.mxu0 0
    %1049 = vmatpush1.bf16.xpose.msra.mxu0 0
    %1050 = vmatprep.subr.bf16.mxu0 0
    %1051 = vmatpush1.bf16.xpose.msra.mxu0 0
    %1052 = vmatprep.subr.bf16.mxu0 0
    %1053 = vmatpush1.bf16.xpose.msra.mxu0 0
    %1054 = vmatprep.subr.bf16.mxu0 0
    %1055 = vmatpush1.bf16.xpose.msra.mxu0 0
    %1056 = vmatprep.subr.bf16.mxu0 0
    %1057 = vmatpush1.bf16.xpose.msra.mxu0 0
    %1058 = vmatprep.subr.bf16.mxu0 0
    %1059 = vmatpush1.bf16.xpose.msra.mxu0 0
    %1060 = vmatprep.subr.bf16.mxu0 0
    %1061 = vmatpush1.bf16.xpose.msra.mxu0 0
    %1062 = vmatprep.mubr.bf16.mxu0 0
    %1063 = vmatmul.mubr.bf16.gmra.mrb[0].mxu0 %v1025
    %v1064 = vpop.f32.mrb[0].mxu0
    %v1065 = vadd.f32 %v307, %v1064
    %v1066 = vpop.f32.mrb[0].mxu0
    %v1067 = vpop.f32.mrb[0].mxu0
    %v1068 = vpop.f32.mrb[0].mxu0
    %1069 = vdwg.mxu0
    %v1070 = vsel %vm313, %v1015, -inf
    %1071 = vmax.xlane.f32.xlu0 %v1070
    %v1072 = vpop.xlane.xlu0 %1071
    %v1073 = vsel %vm313, %v1065, -inf
    %1074 = vmax.xlane.f32.xlu0 %v1073
    %v1075 = vpop.xlane.xlu0 %1074
    %v1076 = vsub.f32 %v1015, %v1072
    %v1077 = vsub.f32 %v1065, %v1075
    %v1078 = vmul.f32 %v1076, 1.442695
    %v1079 = vpow.pop %v1078
    %v1080 = vmul.f32 %v1077, 1.442695
    %v1081 = vpow.pop %v1080
    %v1082 = vsel %vm313, %v1079, 0.0
    %1083 = vadd.xlane.f32.xlu0 %v1082
    %v1084 = vpop.xlane.xlu0 %1083
    %v1085 = vsel %vm313, %v1081, 0.0
    %1086 = vadd.xlane.f32.xlu0 %v1085
    %v1087 = vpop.xlane.xlu0 %1086
    %v1088 = vrcp.pop %v1084
    %v1089 = vrcp.pop %v1087
    %v1090 = vmul.f32 %v1079, %v1088
    %v1091 = vmul.f32 %v1081, %v1089
    %v1092 = vpack.c.bf16 %v1090, %v1090
    %v1093 = vpack.c.bf16 %v1091, %v1091
    %1094 = vrot.lane.b32.xlu0 %v296, 40
    %v1095 = vpop.permute.xlu0 %1094
    %v1097 = vsel %vm313, %v1092, 0
    %v1100 = vsel %vm438, %v1095, 0
    %1102 = vmatprep.subr.bf16.mxu0 0
    %1103 = vmatpush1.bf16.msra.mxu0 %v1100
    %1104 = vmatprep.subr.bf16.mxu0 0
    %1105 = vmatpush1.bf16.msra.mxu0 0
    %1106 = vmatprep.subr.bf16.mxu0 0
    %1107 = vmatpush1.bf16.msra.mxu0 0
    %1108 = vmatprep.subr.bf16.mxu0 0
    %1109 = vmatpush1.bf16.msra.mxu0 0
    %1110 = vmatprep.subr.bf16.mxu0 0
    %1111 = vmatpush1.bf16.msra.mxu0 0
    %1112 = vmatprep.subr.bf16.mxu0 0
    %1113 = vmatpush1.bf16.msra.mxu0 0
    %1114 = vmatprep.subr.bf16.mxu0 0
    %1115 = vmatpush1.bf16.msra.mxu0 0
    %1116 = vmatprep.subr.bf16.mxu0 0
    %1117 = vmatpush1.bf16.msra.mxu0 0
    %1118 = vmatprep.subr.bf16.mxu0 0
    %1119 = vmatpush1.bf16.msra.mxu0 0
    %1120 = vmatprep.subr.bf16.mxu0 0
    %1121 = vmatpush1.bf16.msra.mxu0 0
    %1122 = vmatprep.subr.bf16.mxu0 0
    %1123 = vmatpush1.bf16.msra.mxu0 0
    %1124 = vmatprep.subr.bf16.mxu0 0
    %1125 = vmatpush1.bf16.msra.mxu0 0
    %1126 = vmatprep.subr.bf16.mxu0 0
    %1127 = vmatpush1.bf16.msra.mxu0 0
    %1128 = vmatprep.subr.bf16.mxu0 0
    %1129 = vmatpush1.bf16.msra.mxu0 0
    %1130 = vmatprep.subr.bf16.mxu0 0
    %1131 = vmatpush1.bf16.msra.mxu0 0
    %1132 = vmatprep.subr.bf16.mxu0 0
    %1133 = vmatpush1.bf16.msra.mxu0 0
    %1134 = vmatprep.mubr.bf16.mxu0 0
    %1135 = vmatmul.mubr.bf16.gmra.mrb[0].mxu0 %v1097
    %v1136 = vpop.f32.mrb[0].mxu0
    %v1137 = vadd.f32 0.0, %v1136
    %v1138 = vpop.f32.mrb[0].mxu0
    %v1139 = vpop.f32.mrb[0].mxu0
    %v1140 = vpop.f32.mrb[0].mxu0
    %1141 = vdwg.mxu0
    %1142 = vrot.lane.b32.xlu0 %v297, 40
    %v1143 = vpop.permute.xlu0 %1142
    %v1145 = vsel %vm313, %v1093, 0
    %v1148 = vsel %vm438, %v1143, 0
    %1150 = vmatprep.subr.bf16.mxu0 0
    %1151 = vmatpush1.bf16.msra.mxu0 %v1148
    %1152 = vmatprep.subr.bf16.mxu0 0
    %1153 = vmatpush1.bf16.msra.mxu0 0
    %1154 = vmatprep.subr.bf16.mxu0 0
    %1155 = vmatpush1.bf16.msra.mxu0 0
    %1156 = vmatprep.subr.bf16.mxu0 0
    %1157 = vmatpush1.bf16.msra.mxu0 0
    %1158 = vmatprep.subr.bf16.mxu0 0
    %1159 = vmatpush1.bf16.msra.mxu0 0
    %1160 = vmatprep.subr.bf16.mxu0 0
    %1161 = vmatpush1.bf16.msra.mxu0 0
    %1162 = vmatprep.subr.bf16.mxu0 0
    %1163 = vmatpush1.bf16.msra.mxu0 0
    %1164 = vmatprep.subr.bf16.mxu0 0
    %1165 = vmatpush1.bf16.msra.mxu0 0
    %1166 = vmatprep.subr.bf16.mxu0 0
    %1167 = vmatpush1.bf16.msra.mxu0 0
    %1168 = vmatprep.subr.bf16.mxu0 0
    %1169 = vmatpush1.bf16.msra.mxu0 0
    %1170 = vmatprep.subr.bf16.mxu0 0
    %1171 = vmatpush1.bf16.msra.mxu0 0
    %1172 = vmatprep.subr.bf16.mxu0 0
    %1173 = vmatpush1.bf16.msra.mxu0 0
    %1174 = vmatprep.subr.bf16.mxu0 0
    %1175 = vmatpush1.bf16.msra.mxu0 0
    %1176 = vmatprep.subr.bf16.mxu0 0
    %1177 = vmatpush1.bf16.msra.mxu0 0
    %1178 = vmatprep.subr.bf16.mxu0 0
    %1179 = vmatpush1.bf16.msra.mxu0 0
    %1180 = vmatprep.subr.bf16.mxu0 0
    %1181 = vmatpush1.bf16.msra.mxu0 0
    %1182 = vmatprep.mubr.bf16.mxu0 0
    %1183 = vmatmul.mubr.bf16.gmra.mrb[0].mxu0 %v1145
    %v1184 = vpop.f32.mrb[0].mxu0
    %v1185 = vadd.f32 0.0, %v1184
    %v1186 = vpop.f32.mrb[0].mxu0
    %v1187 = vpop.f32.mrb[0].mxu0
    %v1188 = vpop.f32.mrb[0].mxu0
    %1189 = vdwg.mxu0
    %1192 = vrot.lane.b32.xlu0 %v697, 8
    %v1193 = vpop.permute.xlu0 %1192
    %1194 = vrot.lane.b32.xlu0 %v745, 8
    %v1195 = vpop.permute.xlu0 %1194
    %1200 = vrot.lane.b32.xlu0 %v917, 16
    %v1201 = vpop.permute.xlu0 %1200
    %1202 = vrot.lane.b32.xlu0 %v965, 16
    %v1203 = vpop.permute.xlu0 %1202
    %1208 = vrot.lane.b32.xlu0 %v1137, 24
    %v1209 = vpop.permute.xlu0 %1208
    %1210 = vrot.lane.b32.xlu0 %v1185, 24
    %v1211 = vpop.permute.xlu0 %1210
    %v1214 = vsel %vm313, %v477, %v1193
    %v1215 = vsel %vm313, %v525, %v1195
    %vm1216 = vcmask 130048
    %v1217 = vsel %vm1216, %v1214, %v1201
    %v1218 = vsel %vm1216, %v1215, %v1203
    %vm1219 = vcmask 195584
    %v1220 = vsel %vm1219, %v1217, %v1209
    %v1221 = vsel %vm1219, %v1218, %v1211
    %v1222 = vpack.c.bf16 %v1221, %v1220
    %v1223 = vld [vmem:[#allocation10] sm:$0xf]
    %v1224 = vld [vmem:[#allocation10 + $0x4] sm:$0xf]
    %v1225 = vld [vmem:[#allocation10 + $0x8] sm:$0xf]
    %v1226 = vld [vmem:[#allocation10 + $0xc] sm:$0xf]
    %v1227 = vld [vmem:[#allocation11] sm:$0x1]
    %v1229 = vlaneseq
    %v1230 = vshrl.u32 %v1229, 7
    %v1231 = vsub.s32 0, %v1230
    %v1232 = vrot.slane %v1227, %v1231
    %v1238 = vunpack.c.l.b16 %v1223
    %v1239 = vunpack.c.l.b16 %v1224
    %v1240 = vunpack.c.l.b16 %v1225
    %v1241 = vunpack.c.l.b16 %v1226
    %v1242 = vpack.c.b16 %v1239, %v1238
    %v1243 = vpack.c.b16 %v1241, %v1240
    %v1247 = vsel %vm251, %v1222, 0
    %1249 = vmatprep.subr.bf16.mxu0 0
    %1250 = vmatpush1.bf16.msra.mxu0 %v1242
    %1251 = vmatprep.subr.bf16.mxu0 0
    %1252 = vmatpush1.bf16.msra.mxu0 %v1243
    %1253 = vmatprep.subr.bf16.mxu0 0
    %1254 = vmatpush1.bf16.msra.mxu0 0
    %1255 = vmatprep.subr.bf16.mxu0 0
    %1256 = vmatpush1.bf16.msra.mxu0 0
    %1257 = vmatprep.subr.bf16.mxu0 0
    %1258 = vmatpush1.bf16.msra.mxu0 0
    %1259 = vmatprep.subr.bf16.mxu0 0
    %1260 = vmatpush1.bf16.msra.mxu0 0
    %1261 = vmatprep.subr.bf16.mxu0 0
    %1262 = vmatpush1.bf16.msra.mxu0 0
    %1263 = vmatprep.subr.bf16.mxu0 0
    %1264 = vmatpush1.bf16.msra.mxu0 0
    %1265 = vmatprep.subr.bf16.mxu0 0
    %1266 = vmatpush1.bf16.msra.mxu0 0
    %1267 = vmatprep.subr.bf16.mxu0 0
    %1268 = vmatpush1.bf16.msra.mxu0 0
    %1269 = vmatprep.subr.bf16.mxu0 0
    %1270 = vmatpush1.bf16.msra.mxu0 0
    %1271 = vmatprep.subr.bf16.mxu0 0
    %1272 = vmatpush1.bf16.msra.mxu0 0
    %1273 = vmatprep.subr.bf16.mxu0 0
    %1274 = vmatpush1.bf16.msra.mxu0 0
    %1275 = vmatprep.subr.bf16.mxu0 0
    %1276 = vmatpush1.bf16.msra.mxu0 0
    %1277 = vmatprep.subr.bf16.mxu0 0
    %1278 = vmatpush1.bf16.msra.mxu0 0
    %1279 = vmatprep.subr.bf16.mxu0 0
    %1280 = vmatpush1.bf16.msra.mxu0 0
    %1281 = vmatprep.mubr.bf16.mxu0 0
    %1282 = vmatmul.mubr.bf16.gmra.mrb[0].mxu0 %v1247
    %v1283 = vpop.f32.mrb[0].mxu0
    %v1284 = vadd.f32 %v1232, %v1283
    %v1285 = vpop.f32.mrb[0].mxu0
    %v1286 = vpop.f32.mrb[0].mxu0
    %v1287 = vadd.f32 %v1232, %v1286
    %v1288 = vpop.f32.mrb[0].mxu0
    %1289 = vdwg.mxu0
    %v1290 = vadd.f32 %v223, %v1284
    %v1291 = vadd.f32 %v224, %v1287
    %v1292 = vld [vmem:[#allocation13] sm:$0x1]
    %v1293 = vld [vmem:[#allocation14] sm:$0x1]
    %v1294 = vsel %vm251, %v1290, 0.0
    %1295 = vadd.xlane.f32.xlu0 %v1294
    %v1296 = vpop.xlane.xlu0 %1295
    %v1297 = vsel %vm251, %v1291, 0.0
    %1298 = vadd.xlane.f32.xlu0 %v1297
    %v1299 = vpop.xlane.xlu0 %1298
    %v1300 = vrcp.pop 32.0
    %v1301 = vmul.f32 %v1296, %v1300
    %v1302 = vmul.f32 %v1299, %v1300
    %v1303 = vsub.f32 %v1290, %v1301
    %v1304 = vsub.f32 %v1291, %v1302
    %v1305 = vmul.f32 %v1303, %v1303
    %v1306 = vmul.f32 %v1304, %v1304
    %v1307 = vsel %vm251, %v1305, 0.0
    %1308 = vadd.xlane.f32.xlu0 %v1307
    %v1309 = vpop.xlane.xlu0 %1308
    %v1310 = vsel %vm251, %v1306, 0.0
    %1311 = vadd.xlane.f32.xlu0 %v1310
    %v1312 = vpop.xlane.xlu0 %1311
    %v1313 = vmul.f32 %v1309, 0.032258064
    %v1314 = vmul.f32 %v1312, 0.032258064
    %v1315 = vrsqrt.pop %v1313
    %v1316 = vmul.f32 %v1313, %v1315
    %vm1317 = vcmp.eq.f32.partialorder %v1313, inf
    %v1318 = vsel %vm1317, %v1313, %v1316
    %vm1319 = vcmp.eq.f32.partialorder %v1313, 0.0
    %v1320 = vand.u32 %v1313, 2147483648
    %v1321 = vsel %vm1319, %v1320, %v1318
    %v1322 = vrsqrt.pop %v1314
    %v1323 = vmul.f32 %v1314, %v1322
    %vm1324 = vcmp.eq.f32.partialorder %v1314, inf
    %v1325 = vsel %vm1324, %v1314, %v1323
    %vm1326 = vcmp.eq.f32.partialorder %v1314, 0.0
    %v1327 = vand.u32 %v1314, 2147483648
    %v1328 = vsel %vm1326, %v1327, %v1325
    %v1330 = vlaneseq
    %v1331 = vshrl.u32 %v1330, 7
    %v1332 = vsub.s32 0, %v1331
    %v1333 = vrot.slane %v1292, %v1332
    %v1335 = vmul.f32 %v1333, %v1303
    %v1336 = vmul.f32 %v1333, %v1304
    %v1337 = vadd.f32 %v1321, 1e-06
    %v1338 = vadd.f32 %v1328, 1e-06
    %v1339 = vrcp.pop %v1337
    %v1340 = vmul.f32 %v1335, %v1339
    %v1341 = vrcp.pop %v1338
    %v1342 = vmul.f32 %v1336, %v1341
    %v1344 = vlaneseq
    %v1345 = vshrl.u32 %v1344, 7
    %v1346 = vsub.s32 0, %v1345
    %v1347 = vrot.slane %v1293, %v1346
    %v1349 = vadd.f32 %v1340, %v1347
    %v1350 = vadd.f32 %v1342, %v1347
    %v1351 = vpack.c.bf16 %v1350, %v1349
    %v1352 = vld [vmem:[#allocation16] sm:$0xf]
    %v1353 = vld [vmem:[#allocation16 + $0x4] sm:$0xf]
    %v1354 = vld [vmem:[#allocation16 + $0x8] sm:$0xf]
    %v1355 = vld [vmem:[#allocation16 + $0xc] sm:$0xf]
    %v1356 = vld [vmem:[#allocation17] sm:$0x1]
    %v1358 = vlaneseq
    %v1359 = vshrl.u32 %v1358, 7
    %v1360 = vsub.s32 0, %v1359
    %v1361 = vrot.slane %v1356, %v1360
    %v1367 = vunpack.c.l.b16 %v1352
    %v1368 = vunpack.c.l.b16 %v1353
    %v1369 = vunpack.c.l.b16 %v1354
    %v1370 = vunpack.c.l.b16 %v1355
    %v1371 = vpack.c.b16 %v1368, %v1367
    %v1372 = vpack.c.b16 %v1370, %v1369
    %v1376 = vsel %vm251, %v1351, 0
    %1378 = vmatprep.subr.bf16.mxu0 0
    %1379 = vmatpush1.bf16.msra.mxu0 %v1371
    %1380 = vmatprep.subr.bf16.mxu0 0
    %1381 = vmatpush1.bf16.msra.mxu0 %v1372
    %1382 = vmatprep.subr.bf16.mxu0 0
    %1383 = vmatpush1.bf16.msra.mxu0 0
    %1384 = vmatprep.subr.bf16.mxu0 0
    %1385 = vmatpush1.bf16.msra.mxu0 0
    %1386 = vmatprep.subr.bf16.mxu0 0
    %1387 = vmatpush1.bf16.msra.mxu0 0
    %1388 = vmatprep.subr.bf16.mxu0 0
    %1389 = vmatpush1.bf16.msra.mxu0 0
    %1390 = vmatprep.subr.bf16.mxu0 0
    %1391 = vmatpush1.bf16.msra.mxu0 0
    %1392 = vmatprep.subr.bf16.mxu0 0
    %1393 = vmatpush1.bf16.msra.mxu0 0
    %1394 = vmatprep.subr.bf16.mxu0 0
    %1395 = vmatpush1.bf16.msra.mxu0 0
    %1396 = vmatprep.subr.bf16.mxu0 0
    %1397 = vmatpush1.bf16.msra.mxu0 0
    %1398 = vmatprep.subr.bf16.mxu0 0
    %1399 = vmatpush1.bf16.msra.mxu0 0
    %1400 = vmatprep.subr.bf16.mxu0 0
    %1401 = vmatpush1.bf16.msra.mxu0 0
    %1402 = vmatprep.subr.bf16.mxu0 0
    %1403 = vmatpush1.bf16.msra.mxu0 0
    %1404 = vmatprep.subr.bf16.mxu0 0
    %1405 = vmatpush1.bf16.msra.mxu0 0
    %1406 = vmatprep.subr.bf16.mxu0 0
    %1407 = vmatpush1.bf16.msra.mxu0 0
    %1408 = vmatprep.subr.bf16.mxu0 0
    %1409 = vmatpush1.bf16.msra.mxu0 0
    %1410 = vmatprep.mubr.bf16.mxu0 0
    %1411 = vmatmul.mubr.bf16.gmra.mrb[0].mxu0 %v1376
    %v1412 = vpop.f32.mrb[0].mxu0
    %v1413 = vadd.f32 %v1361, %v1412
    %v1414 = vpop.f32.mrb[0].mxu0
    %v1415 = vpop.f32.mrb[0].mxu0
    %v1416 = vadd.f32 %v1361, %v1415
    %v1417 = vpop.f32.mrb[0].mxu0
    %1418 = vdwg.mxu0
    %v1419 = vmax.f32 %v1413, 0.0
    %v1420 = vmax.f32 %v1416, 0.0
    %v1421 = vpack.c.bf16 %v1420, %v1419
    %v1422 = vld [vmem:[#allocation19] sm:$0xf]
    %v1423 = vld [vmem:[#allocation19 + $0x4] sm:$0xf]
    %v1424 = vld [vmem:[#allocation19 + $0x8] sm:$0xf]
    %v1425 = vld [vmem:[#allocation19 + $0xc] sm:$0xf]
    %v1426 = vld [vmem:[#allocation19 + $0x10] sm:$0xf]
    %v1427 = vld [vmem:[#allocation19 + $0x14] sm:$0xf]
    %v1428 = vld [vmem:[#allocation19 + $0x18] sm:$0xf]
    %v1429 = vld [vmem:[#allocation19 + $0x1c] sm:$0xf]
    %v1430 = vld [vmem:[#allocation19 + $0x20] sm:$0xf]
    %v1431 = vld [vmem:[#allocation19 + $0x24] sm:$0xf]
    %v1432 = vld [vmem:[#allocation19 + $0x28] sm:$0xf]
    %v1433 = vld [vmem:[#allocation19 + $0x2c] sm:$0xf]
    %v1434 = vld [vmem:[#allocation19 + $0x30] sm:$0xf]
    %v1435 = vld [vmem:[#allocation19 + $0x34] sm:$0xf]
    %v1436 = vld [vmem:[#allocation19 + $0x38] sm:$0xf]
    %v1437 = vld [vmem:[#allocation19 + $0x3c] sm:$0xf]
    %v1438 = vld [vmem:[#allocation20] sm:$0x1]
    %v1440 = vlaneseq
    %v1441 = vshrl.u32 %v1440, 7
    %v1442 = vsub.s32 0, %v1441
    %v1443 = vrot.slane %v1438, %v1442
    %v1461 = vunpack.c.l.b16 %v1422
    %v1462 = vunpack.c.l.b16 %v1423
    %v1463 = vunpack.c.l.b16 %v1424
    %v1464 = vunpack.c.l.b16 %v1425
    %v1465 = vunpack.c.l.b16 %v1426
    %v1466 = vunpack.c.l.b16 %v1427
    %v1467 = vunpack.c.l.b16 %v1428
    %v1468 = vunpack.c.l.b16 %v1429
    %v1469 = vunpack.c.l.b16 %v1430
    %v1470 = vunpack.c.l.b16 %v1431
    %v1471 = vunpack.c.l.b16 %v1432
    %v1472 = vunpack.c.l.b16 %v1433
    %v1473 = vunpack.c.l.b16 %v1434
    %v1474 = vunpack.c.l.b16 %v1435
    %v1475 = vunpack.c.l.b16 %v1436
    %v1476 = vunpack.c.l.b16 %v1437
    %v1477 = vpack.c.b16 %v1462, %v1461
    %v1478 = vpack.c.b16 %v1464, %v1463
    %v1479 = vpack.c.b16 %v1466, %v1465
    %v1480 = vpack.c.b16 %v1468, %v1467
    %v1481 = vpack.c.b16 %v1470, %v1469
    %v1482 = vpack.c.b16 %v1472, %v1471
    %v1483 = vpack.c.b16 %v1474, %v1473
    %v1484 = vpack.c.b16 %v1476, %v1475
    %1493 = vmatprep.subr.bf16.mxu0 0
    %1494 = vmatpush1.bf16.msra.mxu0 %v1477
    %1495 = vmatprep.subr.bf16.mxu0 0
    %1496 = vmatpush1.bf16.msra.mxu0 %v1478
    %1497 = vmatprep.subr.bf16.mxu0 0
    %1498 = vmatpush1.bf16.msra.mxu0 %v1479
    %1499 = vmatprep.subr.bf16.mxu0 0
    %1500 = vmatpush1.bf16.msra.mxu0 %v1480
    %1501 = vmatprep.subr.bf16.mxu0 0
    %1502 = vmatpush1.bf16.msra.mxu0 %v1481
    %1503 = vmatprep.subr.bf16.mxu0 0
    %1504 = vmatpush1.bf16.msra.mxu0 %v1482
    %1505 = vmatprep.subr.bf16.mxu0 0
    %1506 = vmatpush1.bf16.msra.mxu0 %v1483
    %1507 = vmatprep.subr.bf16.mxu0 0
    %1508 = vmatpush1.bf16.msra.mxu0 %v1484
    %1509 = vmatprep.subr.bf16.mxu0 0
    %1510 = vmatpush1.bf16.msra.mxu0 0
    %1511 = vmatprep.subr.bf16.mxu0 0
    %1512 = vmatpush1.bf16.msra.mxu0 0
    %1513 = vmatprep.subr.bf16.mxu0 0
    %1514 = vmatpush1.bf16.msra.mxu0 0
    %1515 = vmatprep.subr.bf16.mxu0 0
    %1516 = vmatpush1.bf16.msra.mxu0 0
    %1517 = vmatprep.subr.bf16.mxu0 0
    %1518 = vmatpush1.bf16.msra.mxu0 0
    %1519 = vmatprep.subr.bf16.mxu0 0
    %1520 = vmatpush1.bf16.msra.mxu0 0
    %1521 = vmatprep.subr.bf16.mxu0 0
    %1522 = vmatpush1.bf16.msra.mxu0 0
    %1523 = vmatprep.subr.bf16.mxu0 0
    %1524 = vmatpush1.bf16.msra.mxu0 0
    %1525 = vmatprep.mubr.bf16.mxu0 0
    %1526 = vmatmul.mubr.bf16.gmra.mrb[0].mxu0 %v1421
    %v1527 = vpop.f32.mrb[0].mxu0
    %v1528 = vadd.f32 %v1443, %v1527
    %v1529 = vpop.f32.mrb[0].mxu0
    %v1530 = vpop.f32.mrb[0].mxu0
    %v1531 = vadd.f32 %v1443, %v1530
    %v1532 = vpop.f32.mrb[0].mxu0
    %1533 = vdwg.mxu0
    %v1534 = vadd.f32 %v1349, %v1528
    %v1535 = vadd.f32 %v1350, %v1531
    %v1536 = vld [vmem:[#allocation22] sm:$0x1]
    %v1537 = vld [vmem:[#allocation23] sm:$0x1]
    %v1538 = vsel %vm251, %v1534, 0.0
    %1539 = vadd.xlane.f32.xlu0 %v1538
    %v1540 = vpop.xlane.xlu0 %1539
    %v1541 = vsel %vm251, %v1535, 0.0
    %1542 = vadd.xlane.f32.xlu0 %v1541
    %v1543 = vpop.xlane.xlu0 %1542
    %v1544 = vmul.f32 %v1540, %v1300
    %v1545 = vmul.f32 %v1543, %v1300
    %v1546 = vsub.f32 %v1534, %v1544
    %v1547 = vsub.f32 %v1535, %v1545
    %v1548 = vmul.f32 %v1546, %v1546
    %v1549 = vmul.f32 %v1547, %v1547
    %v1550 = vsel %vm251, %v1548, 0.0
    %1551 = vadd.xlane.f32.xlu0 %v1550
    %v1552 = vpop.xlane.xlu0 %1551
    %v1553 = vsel %vm251, %v1549, 0.0
    %1554 = vadd.xlane.f32.xlu0 %v1553
    %v1555 = vpop.xlane.xlu0 %1554
    %v1556 = vmul.f32 %v1552, 0.032258064
    %v1557 = vmul.f32 %v1555, 0.032258064
    %v1558 = vrsqrt.pop %v1556
    %v1559 = vmul.f32 %v1556, %v1558
    %vm1560 = vcmp.eq.f32.partialorder %v1556, inf
    %v1561 = vsel %vm1560, %v1556, %v1559
    %vm1562 = vcmp.eq.f32.partialorder %v1556, 0.0
    %v1563 = vand.u32 %v1556, 2147483648
    %v1564 = vsel %vm1562, %v1563, %v1561
    %v1565 = vrsqrt.pop %v1557
    %v1566 = vmul.f32 %v1557, %v1565
    %vm1567 = vcmp.eq.f32.partialorder %v1557, inf
    %v1568 = vsel %vm1567, %v1557, %v1566
    %vm1569 = vcmp.eq.f32.partialorder %v1557, 0.0
    %v1570 = vand.u32 %v1557, 2147483648
    %v1571 = vsel %vm1569, %v1570, %v1568
    %v1573 = vlaneseq
    %v1574 = vshrl.u32 %v1573, 7
    %v1575 = vsub.s32 0, %v1574
    %v1576 = vrot.slane %v1536, %v1575
    %v1578 = vmul.f32 %v1576, %v1546
    %v1579 = vmul.f32 %v1576, %v1547
    %v1580 = vadd.f32 %v1564, 1e-06
    %v1581 = vadd.f32 %v1571, 1e-06
    %v1582 = vrcp.pop %v1580
    %v1583 = vmul.f32 %v1578, %v1582
    %v1584 = vrcp.pop %v1581
    %v1585 = vmul.f32 %v1579, %v1584
    %v1587 = vlaneseq
    %v1588 = vshrl.u32 %v1587, 7
    %v1589 = vsub.s32 0, %v1588
    %v1590 = vrot.slane %v1537, %v1589
    %v1592 = vadd.f32 %v1583, %v1590
    %v1593 = vadd.f32 %v1585, %v1590
    %1594 = vst.msk [vmem:[#allocation25] sm:$0xff] %vm251, %v1592
    %1595 = vst.msk [vmem:[#allocation25 + $0x8] sm:$0xff] %vm251, %v1593
    // Predicated region
    $region114: #{tpu_custom_call.1} parent=1 // pred_check
      _
    $region115: #{tpu_custom_call.1} parent=1 // pred_check_branch
      %1597 = sbr.rel (0) target = $region117
    $region116: #{tpu_custom_call.1} parent=1 // pred_region
      %s1599 = ssub.s32 256, 256
      %1600 = vsyncadd [#allocation4], %s1599
      %s1601 = sshll.u32 [#allocation25], 4
      %s1602 = int_to_ptr.vmem [resolvable:$true] %s1601
      %1607 = dma.vmem_to_hbm [thread:$0]  %s1602, 256, %s14, [#allocation4], 128, 128, 8
    $region117: #{tpu_custom_call.1} parent=1 // pred_fallthru
      _
    // Predicated region
    $region118: #{tpu_custom_call.1} parent=1 // pred_check
      _
    $region119: #{tpu_custom_call.1} parent=1 // pred_check_branch
      %1609 = sbr.rel (0) target = $region121
    $region120: #{tpu_custom_call.1} parent=1 // pred_region
      %1610 = dma.done [#allocation4], 256
    $region121: #{tpu_custom_call.1} parent=1 // pred_fallthru
      _
    %1611 = vsyncpa [#allocation3], 1
    %1612 = vsyncpa [#allocation6], 1
    %1613 = vsyncpa [#allocation9], 1
    %1614 = vsyncpa [#allocation12], 1
    %1615 = vsyncpa [#allocation15], 1
    %1616 = vsyncpa [#allocation18], 1
    %1617 = vsyncpa [#allocation21], 1
    %1618 = vsyncpa [#allocation24], 1
    %1619 = vsyncpa [#allocation4], 1

</llo_original>
